<compile_context>
chip_gen: v5e
topology: v5e:2x2
jax: 0.10.0
libtpu: 0.0.40
codegen_flags: <defaults>
</compile_context>

<pallas_src>
import functools

import jax
import jax.numpy as jnp
from jax.experimental import pallas as pl
from jax.experimental.pallas import tpu as pltpu


def _mish_kernel(x_ref, o_ref, *, approx):
    x = x_ref[...].astype(jnp.float32)
    # tanh(softplus(x)) == n / (n + 2) with n = e^x * (e^x + 2) (exact identity).
    # min(x, 20) matches PyTorch's softplus threshold: for x > 20 the ratio
    # rounds to 1.0 in f32 so y == x; the clamp also keeps exp well in range.
    t = jnp.exp(jnp.minimum(x, 20.0))
    n = t * (t + 2.0)
    y = x * n * pl.reciprocal(n + 2.0, approx=approx)
    o_ref[...] = y.astype(o_ref.dtype)


def _mish_jnp(x):
    """Plain-JAX Mish with identical math (tiny inputs / ragged tails)."""
    xf = x.astype(jnp.float32)
    t = jnp.exp(jnp.minimum(xf, 20.0))
    n = t * (t + 2.0)
    return (xf * (n / (n + 2.0))).astype(x.dtype)


def _default_block_bytes():
    """~4 MiB blocks; ~6 MiB on v7x-class chips (faster HBM, 64 MiB VMEM)."""
    block = 4 << 20
    try:
        info = pltpu.get_tpu_info()
        vmem = getattr(info, "vmem_capacity_bytes", None)
        if vmem is not None and vmem <= (64 << 20):
            block = 6 << 20
    except Exception:
        pass
    return block


def _choose_layout(total, sub):
    """Return (lanes, rows) with lanes % 128 == 0 and rows % sub == 0, else None."""
    for lanes in (1024, 512, 256, 128):
        if total % lanes == 0 and (total // lanes) % sub == 0:
            return lanes, total // lanes
    return None


def _mish_2d(x_flat, itemsize, sub, lanes, rows, block_bytes):
    """Run the Pallas kernel over a (rows, lanes) lane-dense slab; return flat."""
    dtype = x_flat.dtype
    if block_bytes is None:
        block_bytes = _default_block_bytes()
    block_bytes = min(block_bytes, 11 << 20)  # keep 4x(in+out) under ~48 MiB

    x2d = x_flat.reshape(rows, lanes)

    # Block rows: aim for ~block_bytes per buffer, sublane-aligned.
    tr = (block_bytes // (lanes * itemsize)) // sub * sub
    tr = max(sub, min(tr, rows))
    # Guarantee >= 2 grid steps so v7x's two TensorCores both get work
    # (the "parallel" grid axis is what shards across cores).
    if rows >= 2 * sub:
        tr = min(tr, max(sub, (rows // 2) // sub * sub))
    grid = (pl.cdiv(rows, tr),)

    tile_bytes = tr * lanes * itemsize
    # in + out, double-buffered, plus slack; explicit so larger blocks don't
    # silently hit the scoped-VMEM default.
    vmem_limit = min(4 * tile_bytes + (4 << 20), 48 << 20)

    approx = itemsize < 4  # EUP approx reciprocal is plenty for bf16/f16 outputs
    kernel = functools.partial(_mish_kernel, approx=approx)

    out2d = pl.pallas_call(
        kernel,
        out_shape=jax.ShapeDtypeStruct((rows, lanes), dtype),
        grid_spec=pltpu.PrefetchScalarGridSpec(
            num_scalar_prefetch=0,
            grid=grid,
            in_specs=[pl.BlockSpec((tr, lanes), lambda i: (i, 0))],
            out_specs=pl.BlockSpec((tr, lanes), lambda i: (i, 0)),
        ),
        compiler_params=pltpu.CompilerParams(
            dimension_semantics=("parallel",),
            vmem_limit_bytes=int(vmem_limit),
        ),
    )(x2d)
    return out2d.reshape(-1)


def mish(x, *, block_bytes=None):
    """Apply Mish elementwise to an array of any shape (NCHW or otherwise)."""
    orig_shape = x.shape
    total = x.size
    if total == 0:
        return x

    # Tiny-input bypass: fixed launch + pipeline fill/drain dominate below
    # ~64K elements; a fused XLA elementwise op is faster.
    if total <= (1 << 16):
        return _mish_jnp(x)

    itemsize = jnp.dtype(x.dtype).itemsize
    sub = max(8, 32 // itemsize)  # dtype-aware sublane packing (8/16/32)
    x_flat = x.reshape(-1)

    layout = _choose_layout(total, sub)
    if layout is None:
        # Non-factoring flat size: kernel on the aligned prefix, plain-jnp on
        # the (< sub*128 element) tail — no pad + slice round trips.
        chunk = sub * 128
        prefix = (total // chunk) * chunk
        lanes, rows = _choose_layout(prefix, sub)
        head = _mish_2d(x_flat[:prefix], itemsize, sub, lanes, rows, block_bytes)
        tail = _mish_jnp(x_flat[prefix:])
        return jnp.concatenate([head, tail]).reshape(orig_shape)

    lanes, rows = layout
    out_flat = _mish_2d(x_flat, itemsize, sub, lanes, rows, block_bytes)
    return out_flat.reshape(orig_shape)


if __name__ == "__main__":
    key = jax.random.PRNGKey(0)
    k1, k2, k3 = jax.random.split(key, 3)

    def ref_mish(x):
        xf = x.astype(jnp.float32)
        sp = jnp.where(xf > 20.0, xf, jnp.log1p(jnp.exp(jnp.minimum(xf, 20.0))))
        return xf * jnp.tanh(sp)

    # 1) Spec-sized NCHW input (tiny-input bypass path).
    x1 = jax.random.normal(k1, (2, 4, 16, 16), dtype=jnp.float32) * 3.0
    y1 = jax.block_until_ready(mish(x1))
    assert jnp.allclose(y1, ref_mish(x1), atol=1e-5, rtol=1e-5)

    # 2) Larger f32 activation (main Pallas path, >= 2 parallel grid steps).
    x2 = jax.random.normal(k2, (2, 32, 64, 64), dtype=jnp.float32) * 3.0
    y2 = jax.block_until_ready(mish(x2))
    assert jnp.allclose(y2, ref_mish(x2), atol=1e-5, rtol=1e-5)

    # 3) Non-factoring flat size (kernel prefix + jnp tail path).
    x3 = jax.random.normal(k3, (65537,), dtype=jnp.float32) * 3.0
    y3 = jax.block_until_ready(mish(x3))
    assert jnp.allclose(y3, ref_mish(x3), atol=1e-5, rtol=1e-5)

    # 4) bf16 I/O (EUP approx-reciprocal path).
    x4 = x2.astype(jnp.bfloat16)
    y4 = jax.block_until_ready(mish(x4))
    assert jnp.allclose(y4.astype(jnp.float32), ref_mish(x4.astype(jnp.float32)),
                        atol=2e-2, rtol=2e-2)

    print("KERNEL_OK")
</pallas_src>

<mosaic_0001>
module attributes {stable_mosaic.version = 11 : i64} {
  func.func @_mish_kernel(%arg0: i32, %arg1: memref<128x1024xf32, #tpu.memory_space<vmem>>, %arg2: memref<128x1024xf32, #tpu.memory_space<vmem>>) attributes {dimension_semantics = [#tpu.dimension_semantics<parallel>], iteration_bounds = array<i64: 2>, scalar_prefetch = 0 : i64, scratch_operands = 0 : i64, tpu.core_type = #tpu.core_type<tc>, window_params = [{transform_indices = @transform_0, window_bounds = array<i64: 128, 1024>}, {transform_indices = @transform_1, window_bounds = array<i64: 128, 1024>}]} {
    %c0 = arith.constant 0 : index
    %c0_0 = arith.constant 0 : index
    %0 = vector.load %arg1[%c0, %c0_0] : memref<128x1024xf32, #tpu.memory_space<vmem>>, vector<128x1024xf32>
    %cst = arith.constant 2.000000e+01 : f32
    %1 = vector.broadcast %cst : f32 to vector<128x1024xf32>
    %2 = arith.minimumf %0, %1 : vector<128x1024xf32>
    %3 = math.exp %2 : vector<128x1024xf32>
    %cst_1 = arith.constant 2.000000e+00 : f32
    %4 = vector.broadcast %cst_1 : f32 to vector<128x1024xf32>
    %5 = arith.addf %3, %4 : vector<128x1024xf32>
    %6 = arith.mulf %3, %5 : vector<128x1024xf32>
    %7 = arith.mulf %0, %6 : vector<128x1024xf32>
    %cst_2 = arith.constant 2.000000e+00 : f32
    %8 = vector.broadcast %cst_2 : f32 to vector<128x1024xf32>
    %9 = arith.addf %6, %8 : vector<128x1024xf32>
    %10 = tpu.reciprocal %9 : vector<128x1024xf32> -> vector<128x1024xf32>
    %11 = arith.mulf %7, %10 : vector<128x1024xf32>
    %c0_3 = arith.constant 0 : index
    %c0_4 = arith.constant 0 : index
    %12 = vector.load %arg2[%c0_3, %c0_4] : memref<128x1024xf32, #tpu.memory_space<vmem>>, vector<128x1024xf32>
    tpu.vector_store %arg2[%c0_3, %c0_4], %11 {strides = array<i32>} : memref<128x1024xf32, #tpu.memory_space<vmem>>, vector<128x1024xf32>,
    return
  }
  func.func @transform_0(%arg0: i32) -> (i32, i32) {
    %c0_i32 = arith.constant 0 : i32
    %c0_i32_0 = arith.constant 0 : i32
    return %arg0, %c0_i32 : i32, i32
  }
  func.func @transform_1(%arg0: i32) -> (i32, i32) {
    %c0_i32 = arith.constant 0 : i32
    %c0_i32_0 = arith.constant 0 : i32
    return %arg0, %c0_i32 : i32, i32
  }
}

</mosaic_0001>

<llo_original>
// kernel: tpu_custom_call.1
$region0: #{tpu_custom_call.1}
  #allocation0 [shape = 'u32[]', space=smem, size = 0x4, offset = 0x4, fixed_abs, tag = 'smem constant byte address 0x4 - core index']
  #allocation1 [shape = 'u32[72,128]{1,0:T(1,128)}', space=vmem, size = 0x9000, scoped, tag = 'internal scratch']
  %s0 = inlined_call_operand.hbm [shape: f32[256,1024], index: 0, kind: input, shape index: {}]
  %s1 = inlined_call_operand.hbm [shape: f32[256,1024], index: 1, kind: output, shape index: {}]
  %s2 = sld [smem:[#allocation0]]
  $region41: #{tpu_custom_call.1} parent=0
    _
  %s4 = ssub.s32 1, %s2
  %s5 = scalar_select 0, %s4, %s2
  $region1: #{tpu_custom_call.1} parent=0
    #allocation2 [shape = 'u8[1048576]{0}', space=vmem, size = 0x100000, scoped, tag = 'input window, operand 0']
    #allocation3 [shape = 's32[2]{0}', space=sflag, size = 0x8, scoped, tag = 'scoped memory for tpu_custom_call.1']
    #allocation4 [shape = 's32[2]{0}', space=sflag, size = 0x8, scoped, tag = 'scoped memory for tpu_custom_call.1']
    #allocation5 [shape = 'u8[1048576]{0}', space=vmem, size = 0x100000, scoped, tag = 'output window, operand 0']
    %6 = vsyncpa [#allocation3], 0
    %s7 = scalar_lea.sflag [#allocation3], 1
    %8 = vsyncpa %s7, 0
    %9 = vsyncpa [#allocation4], 0
    %s10 = scalar_lea.sflag [#allocation4], 1
    %11 = vsyncpa %s10, 0
    loop: start=0, step=1, limit=4
    $region2: #{tpu_custom_call.1} parent=1 // loop_pre_header
      _
    $region3: #{tpu_custom_call.1} parent=1 // loop_header
      %s13 = sphi 0, %s17
      %p14 = scmp.ge.s32.totalorder %s13, 4
      %s23 = sphi 0, %s25
      %s26 = sphi 0, %s23
      %s27 = sphi 0, %s26
      %s43 = sphi 0, %s27
      %s49 = sphi 0, %s51
      %s52 = sphi 0, %s49
      %s53 = sphi 0, %s52
      %s69 = sphi 0, %s53
    $region4: #{tpu_custom_call.1} parent=1 // loop_header_branch
      %16 = sbr.rel (%p14) target = $region8
    $region5: #{tpu_custom_call.1} parent=1 // loop_body
      %s18 = ssub.s32 %s13, 1
      %s19 = ssub.s32 %s13, 2
      %s20 = sadd.s32 %s13, 1
      %s21 = ssub.s32 %s13, %s20
      %p22 = scmp.eq.s32.totalorder %s21, 0
      %s24 = sadd.s32 %s23, 1
      %s25 = scalar_select %p22, %s23, %s24
      %p28 = pneg %p22
      %p29 = scmp.eq.s32.totalorder %s13, 1
      %p30 = por %p28, %p29
      %p31 = scmp.ne.s32.totalorder %s23, %s26
      %p32 = scmp.eq.s32.totalorder %s13, 0
      %p33 = por %p31, %p32
      %p34 = scmp.ne.s32.totalorder %s23, %s26
      %p35 = scmp.eq.s32.totalorder %s18, 1
      %p36 = por %p34, %p35
      %p37 = scmp.ne.s32.totalorder %s26, %s27
      %p38 = scmp.eq.s32.totalorder %s18, 0
      %p39 = por %p37, %p38
      %p40 = scmp.ne.s32.totalorder %s26, %s27
      %p41 = scmp.eq.s32.totalorder %s19, 1
      %p42 = por %p40, %p41
      %p44 = scmp.ne.s32.totalorder %s27, %s43
      %p45 = scmp.eq.s32.totalorder %s19, 0
      %p46 = por %p44, %p45
      %s47 = ssub.s32 %s13, %s20
      %p48 = scmp.eq.s32.totalorder %s47, 0
      %s50 = sadd.s32 %s49, 1
      %s51 = scalar_select %p48, %s49, %s50
      %p54 = pneg %p48
      %p55 = scmp.eq.s32.totalorder %s13, 1
      %p56 = por %p54, %p55
      %p57 = scmp.ne.s32.totalorder %s49, %s52
      %p58 = scmp.eq.s32.totalorder %s13, 0
      %p59 = por %p57, %p58
      %p60 = scmp.ne.s32.totalorder %s49, %s52
      %p61 = scmp.eq.s32.totalorder %s18, 1
      %p62 = por %p60, %p61
      %p63 = scmp.ne.s32.totalorder %s52, %s53
      %p64 = scmp.eq.s32.totalorder %s18, 0
      %p65 = por %p63, %p64
      %p66 = scmp.ne.s32.totalorder %s52, %s53
      %p67 = scmp.eq.s32.totalorder %s19, 1
      %p68 = por %p66, %p67
      %p70 = scmp.ne.s32.totalorder %s53, %s69
      %p71 = scmp.eq.s32.totalorder %s19, 0
      %p72 = por %p70, %p71
      %p73 = scmp.le.s32.totalorder 1, %s13
      %p74 = scmp.lt.s32.totalorder %s13, 3
      %p75 = pnand %p73, %p74
      %p76 = pneg %p75
      // Predicated region
      $region9: #{tpu_custom_call.1} parent=5 // pred_check
        _
      $region10: #{tpu_custom_call.1} parent=5 // pred_check_branch
        %78 = sbr.rel (%p75) target = $region12
      $region11: #{tpu_custom_call.1} parent=5 // pred_region
        %s79 = ssub.s32 %s13, 1
      $region12: #{tpu_custom_call.1} parent=5 // pred_fallthru
        _
      %p80 = scmp.lt.s32.totalorder %s13, 2
      // Predicated region
      $region13: #{tpu_custom_call.1} parent=5 // pred_check
        %p81 = pneg %p80
      $region14: #{tpu_custom_call.1} parent=5 // pred_check_branch
        %83 = sbr.rel (%p81) target = $region16
      $region15: #{tpu_custom_call.1} parent=5 // pred_region
        // Predicated region
        $region17: #{tpu_custom_call.1} parent=15 // pred_check
          %p84 = pneg %p33
        $region18: #{tpu_custom_call.1} parent=15 // pred_check_branch
          %86 = sbr.rel (%p84) target = $region20
        $region19: #{tpu_custom_call.1} parent=15 // pred_region
          %s87 = sand.u32 %s23, 1
          %s88 = scalar_lea.sflag [#allocation3], %s87
          %s89 = sand.u32 %s23, 1
          %s90 = smul.addr %s89, 1024
          %s91 = scalar_lea.vmem [#allocation2], %s90
          %s92 = smul.u32 16, %s13
          %94 = vsyncadd %s88, 0
          %s95 = smul.addr %s92, 8
          %s96 = smul.addr %s95, 8
          %s97 = scalar_lea.hbm %s0, %s96
          %s98 = sshll.u32 %s97, 4
          %s99 = int_to_ptr.hbm [resolvable:$true] %s98
          %s100 = sshll.u32 %s91, 4
          %s101 = int_to_ptr.vmem [resolvable:$true] %s100
          %106 = dma.hbm_to_vmem [thread:$0]  %s99, 16384, %s101, %s88, 1024, 1024, 64
        $region20: #{tpu_custom_call.1} parent=15 // pred_fallthru
          _
      $region16: #{tpu_custom_call.1} parent=5 // pred_fallthru
        _
      %p107 = scmp.le.s32.totalorder 1, %s13
      %p108 = scmp.lt.s32.totalorder %s13, 3
      %p109 = pnand %p107, %p108
      %p110 = pneg %p109
      // Predicated region
      $region21: #{tpu_custom_call.1} parent=5 // pred_check
        _
      $region22: #{tpu_custom_call.1} parent=5 // pred_check_branch
        %112 = sbr.rel (%p109) target = $region24
      $region23: #{tpu_custom_call.1} parent=5 // pred_region
        %s113 = ssub.s32 %s13, 1
        %s114 = sand.u32 %s26, 1
        %s115 = scalar_lea.sflag [#allocation3], %s114
        %s116 = sand.u32 %s26, 1
        %s117 = smul.addr %s116, 1024
        %s118 = scalar_lea.vmem [#allocation2], %s117
        // Predicated region
        $region25: #{tpu_custom_call.1} parent=23 // pred_check
          %p119 = pneg %p39
        $region26: #{tpu_custom_call.1} parent=23 // pred_check_branch
          %121 = sbr.rel (%p119) target = $region28
        $region27: #{tpu_custom_call.1} parent=23 // pred_region
          %123 = dma.done %s115, 16384
        $region28: #{tpu_custom_call.1} parent=23 // pred_fallthru
          _
        %s124 = sand.u32 %s26, 1
        %s125 = scalar_lea.sflag [#allocation3], %s124
        %s126 = sand.u32 %s26, 1
        %s127 = smul.addr %s126, 1024
        %s128 = scalar_lea.vmem [#allocation2], %s127
        %p129 = pneg %p39
        %p130 = pneg %p36
        %p131 = pneg %p65
        %p132 = pneg %p62
        %s133 = sand.u32 %s52, 1
        %s134 = scalar_lea.sflag [#allocation4], %s133
        %s135 = sand.u32 %s52, 1
        %s136 = smul.addr %s135, 1024
        %s137 = scalar_lea.vmem [#allocation5], %s136
        %s138 = smul.u32 16, %s18
        %s139 = smul.u32 16, %s18
        %v140 = vld [vmem:[%s118] sm:$0xff]
        %v141 = vld [vmem:[%s118 + $0x8] sm:$0xff]
        %v142 = vld [vmem:[%s118 + $0x10] sm:$0xff]
        %v143 = vld [vmem:[%s118 + $0x18] sm:$0xff]
        %v144 = vld [vmem:[%s118 + $0x20] sm:$0xff]
        %v145 = vld [vmem:[%s118 + $0x28] sm:$0xff]
        %v146 = vld [vmem:[%s118 + $0x30] sm:$0xff]
        %v147 = vld [vmem:[%s118 + $0x38] sm:$0xff]
        %v148 = vld [vmem:[%s118 + $0x40] sm:$0xff]
        %v149 = vld [vmem:[%s118 + $0x48] sm:$0xff]
        %v150 = vld [vmem:[%s118 + $0x50] sm:$0xff]
        %v151 = vld [vmem:[%s118 + $0x58] sm:$0xff]
        %v152 = vld [vmem:[%s118 + $0x60] sm:$0xff]
        %v153 = vld [vmem:[%s118 + $0x68] sm:$0xff]
        %v154 = vld [vmem:[%s118 + $0x70] sm:$0xff]
        %v155 = vld [vmem:[%s118 + $0x78] sm:$0xff]
        %v156 = vld [vmem:[%s118 + $0x80] sm:$0xff]
        %v157 = vld [vmem:[%s118 + $0x88] sm:$0xff]
        %v158 = vld [vmem:[%s118 + $0x90] sm:$0xff]
        %v159 = vld [vmem:[%s118 + $0x98] sm:$0xff]
        %v160 = vld [vmem:[%s118 + $0xa0] sm:$0xff]
        %v161 = vld [vmem:[%s118 + $0xa8] sm:$0xff]
        %v162 = vld [vmem:[%s118 + $0xb0] sm:$0xff]
        %v163 = vld [vmem:[%s118 + $0xb8] sm:$0xff]
        %v164 = vld [vmem:[%s118 + $0xc0] sm:$0xff]
        %v165 = vld [vmem:[%s118 + $0xc8] sm:$0xff]
        %v166 = vld [vmem:[%s118 + $0xd0] sm:$0xff]
        %v167 = vld [vmem:[%s118 + $0xd8] sm:$0xff]
        %v168 = vld [vmem:[%s118 + $0xe0] sm:$0xff]
        %v169 = vld [vmem:[%s118 + $0xe8] sm:$0xff]
        %v170 = vld [vmem:[%s118 + $0xf0] sm:$0xff]
        %v171 = vld [vmem:[%s118 + $0xf8] sm:$0xff]
        %v172 = vld [vmem:[%s118 + $0x100] sm:$0xff]
        %v173 = vld [vmem:[%s118 + $0x108] sm:$0xff]
        %v174 = vld [vmem:[%s118 + $0x110] sm:$0xff]
        %v175 = vld [vmem:[%s118 + $0x118] sm:$0xff]
        %v176 = vld [vmem:[%s118 + $0x120] sm:$0xff]
        %v177 = vld [vmem:[%s118 + $0x128] sm:$0xff]
        %v178 = vld [vmem:[%s118 + $0x130] sm:$0xff]
        %v179 = vld [vmem:[%s118 + $0x138] sm:$0xff]
        %v180 = vld [vmem:[%s118 + $0x140] sm:$0xff]
        %v181 = vld [vmem:[%s118 + $0x148] sm:$0xff]
        %v182 = vld [vmem:[%s118 + $0x150] sm:$0xff]
        %v183 = vld [vmem:[%s118 + $0x158] sm:$0xff]
        %v184 = vld [vmem:[%s118 + $0x160] sm:$0xff]
        %v185 = vld [vmem:[%s118 + $0x168] sm:$0xff]
        %v186 = vld [vmem:[%s118 + $0x170] sm:$0xff]
        %v187 = vld [vmem:[%s118 + $0x178] sm:$0xff]
        %v188 = vld [vmem:[%s118 + $0x180] sm:$0xff]
        %v189 = vld [vmem:[%s118 + $0x188] sm:$0xff]
        %v190 = vld [vmem:[%s118 + $0x190] sm:$0xff]
        %v191 = vld [vmem:[%s118 + $0x198] sm:$0xff]
        %v192 = vld [vmem:[%s118 + $0x1a0] sm:$0xff]
        %v193 = vld [vmem:[%s118 + $0x1a8] sm:$0xff]
        %v194 = vld [vmem:[%s118 + $0x1b0] sm:$0xff]
        %v195 = vld [vmem:[%s118 + $0x1b8] sm:$0xff]
        %v196 = vld [vmem:[%s118 + $0x1c0] sm:$0xff]
        %v197 = vld [vmem:[%s118 + $0x1c8] sm:$0xff]
        %v198 = vld [vmem:[%s118 + $0x1d0] sm:$0xff]
        %v199 = vld [vmem:[%s118 + $0x1d8] sm:$0xff]
        %v200 = vld [vmem:[%s118 + $0x1e0] sm:$0xff]
        %v201 = vld [vmem:[%s118 + $0x1e8] sm:$0xff]
        %v202 = vld [vmem:[%s118 + $0x1f0] sm:$0xff]
        %v203 = vld [vmem:[%s118 + $0x1f8] sm:$0xff]
        %v204 = vld [vmem:[%s118 + $0x200] sm:$0xff]
        %v205 = vld [vmem:[%s118 + $0x208] sm:$0xff]
        %v206 = vld [vmem:[%s118 + $0x210] sm:$0xff]
        %v207 = vld [vmem:[%s118 + $0x218] sm:$0xff]
        %v208 = vld [vmem:[%s118 + $0x220] sm:$0xff]
        %v209 = vld [vmem:[%s118 + $0x228] sm:$0xff]
        %v210 = vld [vmem:[%s118 + $0x230] sm:$0xff]
        %v211 = vld [vmem:[%s118 + $0x238] sm:$0xff]
        %v212 = vld [vmem:[%s118 + $0x240] sm:$0xff]
        %v213 = vld [vmem:[%s118 + $0x248] sm:$0xff]
        %v214 = vld [vmem:[%s118 + $0x250] sm:$0xff]
        %v215 = vld [vmem:[%s118 + $0x258] sm:$0xff]
        %v216 = vld [vmem:[%s118 + $0x260] sm:$0xff]
        %v217 = vld [vmem:[%s118 + $0x268] sm:$0xff]
        %v218 = vld [vmem:[%s118 + $0x270] sm:$0xff]
        %v219 = vld [vmem:[%s118 + $0x278] sm:$0xff]
        %v220 = vld [vmem:[%s118 + $0x280] sm:$0xff]
        %v221 = vld [vmem:[%s118 + $0x288] sm:$0xff]
        %v222 = vld [vmem:[%s118 + $0x290] sm:$0xff]
        %v223 = vld [vmem:[%s118 + $0x298] sm:$0xff]
        %v224 = vld [vmem:[%s118 + $0x2a0] sm:$0xff]
        %v225 = vld [vmem:[%s118 + $0x2a8] sm:$0xff]
        %v226 = vld [vmem:[%s118 + $0x2b0] sm:$0xff]
        %v227 = vld [vmem:[%s118 + $0x2b8] sm:$0xff]
        %v228 = vld [vmem:[%s118 + $0x2c0] sm:$0xff]
        %v229 = vld [vmem:[%s118 + $0x2c8] sm:$0xff]
        %v230 = vld [vmem:[%s118 + $0x2d0] sm:$0xff]
        %v231 = vld [vmem:[%s118 + $0x2d8] sm:$0xff]
        %v232 = vld [vmem:[%s118 + $0x2e0] sm:$0xff]
        %v233 = vld [vmem:[%s118 + $0x2e8] sm:$0xff]
        %v234 = vld [vmem:[%s118 + $0x2f0] sm:$0xff]
        %v235 = vld [vmem:[%s118 + $0x2f8] sm:$0xff]
        %v236 = vld [vmem:[%s118 + $0x300] sm:$0xff]
        %v237 = vld [vmem:[%s118 + $0x308] sm:$0xff]
        %v238 = vld [vmem:[%s118 + $0x310] sm:$0xff]
        %v239 = vld [vmem:[%s118 + $0x318] sm:$0xff]
        %v240 = vld [vmem:[%s118 + $0x320] sm:$0xff]
        %v241 = vld [vmem:[%s118 + $0x328] sm:$0xff]
        %v242 = vld [vmem:[%s118 + $0x330] sm:$0xff]
        %v243 = vld [vmem:[%s118 + $0x338] sm:$0xff]
        %v244 = vld [vmem:[%s118 + $0x340] sm:$0xff]
        %v245 = vld [vmem:[%s118 + $0x348] sm:$0xff]
        %v246 = vld [vmem:[%s118 + $0x350] sm:$0xff]
        %v247 = vld [vmem:[%s118 + $0x358] sm:$0xff]
        %v248 = vld [vmem:[%s118 + $0x360] sm:$0xff]
        %v249 = vld [vmem:[%s118 + $0x368] sm:$0xff]
        %v250 = vld [vmem:[%s118 + $0x370] sm:$0xff]
        %v251 = vld [vmem:[%s118 + $0x378] sm:$0xff]
        %v252 = vld [vmem:[%s118 + $0x380] sm:$0xff]
        %v253 = vld [vmem:[%s118 + $0x388] sm:$0xff]
        %v254 = vld [vmem:[%s118 + $0x390] sm:$0xff]
        %v255 = vld [vmem:[%s118 + $0x398] sm:$0xff]
        %v256 = vld [vmem:[%s118 + $0x3a0] sm:$0xff]
        %v257 = vld [vmem:[%s118 + $0x3a8] sm:$0xff]
        %v258 = vld [vmem:[%s118 + $0x3b0] sm:$0xff]
        %v259 = vld [vmem:[%s118 + $0x3b8] sm:$0xff]
        %v260 = vld [vmem:[%s118 + $0x3c0] sm:$0xff]
        %v261 = vld [vmem:[%s118 + $0x3c8] sm:$0xff]
        %v262 = vld [vmem:[%s118 + $0x3d0] sm:$0xff]
        %v263 = vld [vmem:[%s118 + $0x3d8] sm:$0xff]
        %v264 = vld [vmem:[%s118 + $0x3e0] sm:$0xff]
        %v265 = vld [vmem:[%s118 + $0x3e8] sm:$0xff]
        %v266 = vld [vmem:[%s118 + $0x3f0] sm:$0xff]
        %v267 = vld [vmem:[%s118 + $0x3f8] sm:$0xff]
        %v268 = vmin.f32 %v140, 20.0
        %v269 = vmin.f32 %v141, 20.0
        %v270 = vmin.f32 %v142, 20.0
        %v271 = vmin.f32 %v143, 20.0
        %v272 = vmin.f32 %v144, 20.0
        %v273 = vmin.f32 %v145, 20.0
        %v274 = vmin.f32 %v146, 20.0
        %v275 = vmin.f32 %v147, 20.0
        %v276 = vmin.f32 %v148, 20.0
        %v277 = vmin.f32 %v149, 20.0
        %v278 = vmin.f32 %v150, 20.0
        %v279 = vmin.f32 %v151, 20.0
        %v280 = vmin.f32 %v152, 20.0
        %v281 = vmin.f32 %v153, 20.0
        %v282 = vmin.f32 %v154, 20.0
        %v283 = vmin.f32 %v155, 20.0
        %v284 = vmin.f32 %v156, 20.0
        %v285 = vmin.f32 %v157, 20.0
        %v286 = vmin.f32 %v158, 20.0
        %v287 = vmin.f32 %v159, 20.0
        %v288 = vmin.f32 %v160, 20.0
        %v289 = vmin.f32 %v161, 20.0
        %v290 = vmin.f32 %v162, 20.0
        %v291 = vmin.f32 %v163, 20.0
        %v292 = vmin.f32 %v164, 20.0
        %v293 = vmin.f32 %v165, 20.0
        %v294 = vmin.f32 %v166, 20.0
        %v295 = vmin.f32 %v167, 20.0
        %v296 = vmin.f32 %v168, 20.0
        %v297 = vmin.f32 %v169, 20.0
        %v298 = vmin.f32 %v170, 20.0
        %v299 = vmin.f32 %v171, 20.0
        %v300 = vmin.f32 %v172, 20.0
        %v301 = vmin.f32 %v173, 20.0
        %v302 = vmin.f32 %v174, 20.0
        %v303 = vmin.f32 %v175, 20.0
        %v304 = vmin.f32 %v176, 20.0
        %v305 = vmin.f32 %v177, 20.0
        %v306 = vmin.f32 %v178, 20.0
        %v307 = vmin.f32 %v179, 20.0
        %v308 = vmin.f32 %v180, 20.0
        %v309 = vmin.f32 %v181, 20.0
        %v310 = vmin.f32 %v182, 20.0
        %v311 = vmin.f32 %v183, 20.0
        %v312 = vmin.f32 %v184, 20.0
        %v313 = vmin.f32 %v185, 20.0
        %v314 = vmin.f32 %v186, 20.0
        %v315 = vmin.f32 %v187, 20.0
        %v316 = vmin.f32 %v188, 20.0
        %v317 = vmin.f32 %v189, 20.0
        %v318 = vmin.f32 %v190, 20.0
        %v319 = vmin.f32 %v191, 20.0
        %v320 = vmin.f32 %v192, 20.0
        %v321 = vmin.f32 %v193, 20.0
        %v322 = vmin.f32 %v194, 20.0
        %v323 = vmin.f32 %v195, 20.0
        %v324 = vmin.f32 %v196, 20.0
        %v325 = vmin.f32 %v197, 20.0
        %v326 = vmin.f32 %v198, 20.0
        %v327 = vmin.f32 %v199, 20.0
        %v328 = vmin.f32 %v200, 20.0
        %v329 = vmin.f32 %v201, 20.0
        %v330 = vmin.f32 %v202, 20.0
        %v331 = vmin.f32 %v203, 20.0
        %v332 = vmin.f32 %v204, 20.0
        %v333 = vmin.f32 %v205, 20.0
        %v334 = vmin.f32 %v206, 20.0
        %v335 = vmin.f32 %v207, 20.0
        %v336 = vmin.f32 %v208, 20.0
        %v337 = vmin.f32 %v209, 20.0
        %v338 = vmin.f32 %v210, 20.0
        %v339 = vmin.f32 %v211, 20.0
        %v340 = vmin.f32 %v212, 20.0
        %v341 = vmin.f32 %v213, 20.0
        %v342 = vmin.f32 %v214, 20.0
        %v343 = vmin.f32 %v215, 20.0
        %v344 = vmin.f32 %v216, 20.0
        %v345 = vmin.f32 %v217, 20.0
        %v346 = vmin.f32 %v218, 20.0
        %v347 = vmin.f32 %v219, 20.0
        %v348 = vmin.f32 %v220, 20.0
        %v349 = vmin.f32 %v221, 20.0
        %v350 = vmin.f32 %v222, 20.0
        %v351 = vmin.f32 %v223, 20.0
        %v352 = vmin.f32 %v224, 20.0
        %v353 = vmin.f32 %v225, 20.0
        %v354 = vmin.f32 %v226, 20.0
        %v355 = vmin.f32 %v227, 20.0
        %v356 = vmin.f32 %v228, 20.0
        %v357 = vmin.f32 %v229, 20.0
        %v358 = vmin.f32 %v230, 20.0
        %v359 = vmin.f32 %v231, 20.0
        %v360 = vmin.f32 %v232, 20.0
        %v361 = vmin.f32 %v233, 20.0
        %v362 = vmin.f32 %v234, 20.0
        %v363 = vmin.f32 %v235, 20.0
        %v364 = vmin.f32 %v236, 20.0
        %v365 = vmin.f32 %v237, 20.0
        %v366 = vmin.f32 %v238, 20.0
        %v367 = vmin.f32 %v239, 20.0
        %v368 = vmin.f32 %v240, 20.0
        %v369 = vmin.f32 %v241, 20.0
        %v370 = vmin.f32 %v242, 20.0
        %v371 = vmin.f32 %v243, 20.0
        %v372 = vmin.f32 %v244, 20.0
        %v373 = vmin.f32 %v245, 20.0
        %v374 = vmin.f32 %v246, 20.0
        %v375 = vmin.f32 %v247, 20.0
        %v376 = vmin.f32 %v248, 20.0
        %v377 = vmin.f32 %v249, 20.0
        %v378 = vmin.f32 %v250, 20.0
        %v379 = vmin.f32 %v251, 20.0
        %v380 = vmin.f32 %v252, 20.0
        %v381 = vmin.f32 %v253, 20.0
        %v382 = vmin.f32 %v254, 20.0
        %v383 = vmin.f32 %v255, 20.0
        %v384 = vmin.f32 %v256, 20.0
        %v385 = vmin.f32 %v257, 20.0
        %v386 = vmin.f32 %v258, 20.0
        %v387 = vmin.f32 %v259, 20.0
        %v388 = vmin.f32 %v260, 20.0
        %v389 = vmin.f32 %v261, 20.0
        %v390 = vmin.f32 %v262, 20.0
        %v391 = vmin.f32 %v263, 20.0
        %v392 = vmin.f32 %v264, 20.0
        %v393 = vmin.f32 %v265, 20.0
        %v394 = vmin.f32 %v266, 20.0
        %v395 = vmin.f32 %v267, 20.0
        %v396 = vmul.f32 %v268, 1.442695
        %v397 = vpow.pop %v396
        %v398 = vmul.f32 %v269, 1.442695
        %v399 = vpow.pop %v398
        %v400 = vmul.f32 %v270, 1.442695
        %v401 = vpow.pop %v400
        %v402 = vmul.f32 %v271, 1.442695
        %v403 = vpow.pop %v402
        %v404 = vmul.f32 %v272, 1.442695
        %v405 = vpow.pop %v404
        %v406 = vmul.f32 %v273, 1.442695
        %v407 = vpow.pop %v406
        %v408 = vmul.f32 %v274, 1.442695
        %v409 = vpow.pop %v408
        %v410 = vmul.f32 %v275, 1.442695
        %v411 = vpow.pop %v410
        %v412 = vmul.f32 %v276, 1.442695
        %v413 = vpow.pop %v412
        %v414 = vmul.f32 %v277, 1.442695
        %v415 = vpow.pop %v414
        %v416 = vmul.f32 %v278, 1.442695
        %v417 = vpow.pop %v416
        %v418 = vmul.f32 %v279, 1.442695
        %v419 = vpow.pop %v418
        %v420 = vmul.f32 %v280, 1.442695
        %v421 = vpow.pop %v420
        %v422 = vmul.f32 %v281, 1.442695
        %v423 = vpow.pop %v422
        %v424 = vmul.f32 %v282, 1.442695
        %v425 = vpow.pop %v424
        %v426 = vmul.f32 %v283, 1.442695
        %v427 = vpow.pop %v426
        %v428 = vmul.f32 %v284, 1.442695
        %v429 = vpow.pop %v428
        %v430 = vmul.f32 %v285, 1.442695
        %v431 = vpow.pop %v430
        %v432 = vmul.f32 %v286, 1.442695
        %v433 = vpow.pop %v432
        %v434 = vmul.f32 %v287, 1.442695
        %v435 = vpow.pop %v434
        %v436 = vmul.f32 %v288, 1.442695
        %v437 = vpow.pop %v436
        %v438 = vmul.f32 %v289, 1.442695
        %v439 = vpow.pop %v438
        %v440 = vmul.f32 %v290, 1.442695
        %v441 = vpow.pop %v440
        %v442 = vmul.f32 %v291, 1.442695
        %v443 = vpow.pop %v442
        %v444 = vmul.f32 %v292, 1.442695
        %v445 = vpow.pop %v444
        %v446 = vmul.f32 %v293, 1.442695
        %v447 = vpow.pop %v446
        %v448 = vmul.f32 %v294, 1.442695
        %v449 = vpow.pop %v448
        %v450 = vmul.f32 %v295, 1.442695
        %v451 = vpow.pop %v450
        %v452 = vmul.f32 %v296, 1.442695
        %v453 = vpow.pop %v452
        %v454 = vmul.f32 %v297, 1.442695
        %v455 = vpow.pop %v454
        %v456 = vmul.f32 %v298, 1.442695
        %v457 = vpow.pop %v456
        %v458 = vmul.f32 %v299, 1.442695
        %v459 = vpow.pop %v458
        %v460 = vmul.f32 %v300, 1.442695
        %v461 = vpow.pop %v460
        %v462 = vmul.f32 %v301, 1.442695
        %v463 = vpow.pop %v462
        %v464 = vmul.f32 %v302, 1.442695
        %v465 = vpow.pop %v464
        %v466 = vmul.f32 %v303, 1.442695
        %v467 = vpow.pop %v466
        %v468 = vmul.f32 %v304, 1.442695
        %v469 = vpow.pop %v468
        %v470 = vmul.f32 %v305, 1.442695
        %v471 = vpow.pop %v470
        %v472 = vmul.f32 %v306, 1.442695
        %v473 = vpow.pop %v472
        %v474 = vmul.f32 %v307, 1.442695
        %v475 = vpow.pop %v474
        %v476 = vmul.f32 %v308, 1.442695
        %v477 = vpow.pop %v476
        %v478 = vmul.f32 %v309, 1.442695
        %v479 = vpow.pop %v478
        %v480 = vmul.f32 %v310, 1.442695
        %v481 = vpow.pop %v480
        %v482 = vmul.f32 %v311, 1.442695
        %v483 = vpow.pop %v482
        %v484 = vmul.f32 %v312, 1.442695
        %v485 = vpow.pop %v484
        %v486 = vmul.f32 %v313, 1.442695
        %v487 = vpow.pop %v486
        %v488 = vmul.f32 %v314, 1.442695
        %v489 = vpow.pop %v488
        %v490 = vmul.f32 %v315, 1.442695
        %v491 = vpow.pop %v490
        %v492 = vmul.f32 %v316, 1.442695
        %v493 = vpow.pop %v492
        %v494 = vmul.f32 %v317, 1.442695
        %v495 = vpow.pop %v494
        %v496 = vmul.f32 %v318, 1.442695
        %v497 = vpow.pop %v496
        %v498 = vmul.f32 %v319, 1.442695
        %v499 = vpow.pop %v498
        %v500 = vmul.f32 %v320, 1.442695
        %v501 = vpow.pop %v500
        %v502 = vmul.f32 %v321, 1.442695
        %v503 = vpow.pop %v502
        %v504 = vmul.f32 %v322, 1.442695
        %v505 = vpow.pop %v504
        %v506 = vmul.f32 %v323, 1.442695
        %v507 = vpow.pop %v506
        %v508 = vmul.f32 %v324, 1.442695
        %v509 = vpow.pop %v508
        %v510 = vmul.f32 %v325, 1.442695
        %v511 = vpow.pop %v510
        %v512 = vmul.f32 %v326, 1.442695
        %v513 = vpow.pop %v512
        %v514 = vmul.f32 %v327, 1.442695
        %v515 = vpow.pop %v514
        %v516 = vmul.f32 %v328, 1.442695
        %v517 = vpow.pop %v516
        %v518 = vmul.f32 %v329, 1.442695
        %v519 = vpow.pop %v518
        %v520 = vmul.f32 %v330, 1.442695
        %v521 = vpow.pop %v520
        %v522 = vmul.f32 %v331, 1.442695
        %v523 = vpow.pop %v522
        %v524 = vmul.f32 %v332, 1.442695
        %v525 = vpow.pop %v524
        %v526 = vmul.f32 %v333, 1.442695
        %v527 = vpow.pop %v526
        %v528 = vmul.f32 %v334, 1.442695
        %v529 = vpow.pop %v528
        %v530 = vmul.f32 %v335, 1.442695
        %v531 = vpow.pop %v530
        %v532 = vmul.f32 %v336, 1.442695
        %v533 = vpow.pop %v532
        %v534 = vmul.f32 %v337, 1.442695
        %v535 = vpow.pop %v534
        %v536 = vmul.f32 %v338, 1.442695
        %v537 = vpow.pop %v536
        %v538 = vmul.f32 %v339, 1.442695
        %v539 = vpow.pop %v538
        %v540 = vmul.f32 %v340, 1.442695
        %v541 = vpow.pop %v540
        %v542 = vmul.f32 %v341, 1.442695
        %v543 = vpow.pop %v542
        %v544 = vmul.f32 %v342, 1.442695
        %v545 = vpow.pop %v544
        %v546 = vmul.f32 %v343, 1.442695
        %v547 = vpow.pop %v546
        %v548 = vmul.f32 %v344, 1.442695
        %v549 = vpow.pop %v548
        %v550 = vmul.f32 %v345, 1.442695
        %v551 = vpow.pop %v550
        %v552 = vmul.f32 %v346, 1.442695
        %v553 = vpow.pop %v552
        %v554 = vmul.f32 %v347, 1.442695
        %v555 = vpow.pop %v554
        %v556 = vmul.f32 %v348, 1.442695
        %v557 = vpow.pop %v556
        %v558 = vmul.f32 %v349, 1.442695
        %v559 = vpow.pop %v558
        %v560 = vmul.f32 %v350, 1.442695
        %v561 = vpow.pop %v560
        %v562 = vmul.f32 %v351, 1.442695
        %v563 = vpow.pop %v562
        %v564 = vmul.f32 %v352, 1.442695
        %v565 = vpow.pop %v564
        %v566 = vmul.f32 %v353, 1.442695
        %v567 = vpow.pop %v566
        %v568 = vmul.f32 %v354, 1.442695
        %v569 = vpow.pop %v568
        %v570 = vmul.f32 %v355, 1.442695
        %v571 = vpow.pop %v570
        %v572 = vmul.f32 %v356, 1.442695
        %v573 = vpow.pop %v572
        %v574 = vmul.f32 %v357, 1.442695
        %v575 = vpow.pop %v574
        %v576 = vmul.f32 %v358, 1.442695
        %v577 = vpow.pop %v576
        %v578 = vmul.f32 %v359, 1.442695
        %v579 = vpow.pop %v578
        %v580 = vmul.f32 %v360, 1.442695
        %v581 = vpow.pop %v580
        %v582 = vmul.f32 %v361, 1.442695
        %v583 = vpow.pop %v582
        %v584 = vmul.f32 %v362, 1.442695
        %v585 = vpow.pop %v584
        %v586 = vmul.f32 %v363, 1.442695
        %v587 = vpow.pop %v586
        %v588 = vmul.f32 %v364, 1.442695
        %v589 = vpow.pop %v588
        %v590 = vmul.f32 %v365, 1.442695
        %v591 = vpow.pop %v590
        %v592 = vmul.f32 %v366, 1.442695
        %v593 = vpow.pop %v592
        %v594 = vmul.f32 %v367, 1.442695
        %v595 = vpow.pop %v594
        %v596 = vmul.f32 %v368, 1.442695
        %v597 = vpow.pop %v596
        %v598 = vmul.f32 %v369, 1.442695
        %v599 = vpow.pop %v598
        %v600 = vmul.f32 %v370, 1.442695
        %v601 = vpow.pop %v600
        %v602 = vmul.f32 %v371, 1.442695
        %v603 = vpow.pop %v602
        %v604 = vmul.f32 %v372, 1.442695
        %v605 = vpow.pop %v604
        %v606 = vmul.f32 %v373, 1.442695
        %v607 = vpow.pop %v606
        %v608 = vmul.f32 %v374, 1.442695
        %v609 = vpow.pop %v608
        %v610 = vmul.f32 %v375, 1.442695
        %v611 = vpow.pop %v610
        %v612 = vmul.f32 %v376, 1.442695
        %v613 = vpow.pop %v612
        %v614 = vmul.f32 %v377, 1.442695
        %v615 = vpow.pop %v614
        %v616 = vmul.f32 %v378, 1.442695
        %v617 = vpow.pop %v616
        %v618 = vmul.f32 %v379, 1.442695
        %v619 = vpow.pop %v618
        %v620 = vmul.f32 %v380, 1.442695
        %v621 = vpow.pop %v620
        %v622 = vmul.f32 %v381, 1.442695
        %v623 = vpow.pop %v622
        %v624 = vmul.f32 %v382, 1.442695
        %v625 = vpow.pop %v624
        %v626 = vmul.f32 %v383, 1.442695
        %v627 = vpow.pop %v626
        %v628 = vmul.f32 %v384, 1.442695
        %v629 = vpow.pop %v628
        %v630 = vmul.f32 %v385, 1.442695
        %v631 = vpow.pop %v630
        %v632 = vmul.f32 %v386, 1.442695
        %v633 = vpow.pop %v632
        %v634 = vmul.f32 %v387, 1.442695
        %v635 = vpow.pop %v634
        %v636 = vmul.f32 %v388, 1.442695
        %v637 = vpow.pop %v636
        %v638 = vmul.f32 %v389, 1.442695
        %v639 = vpow.pop %v638
        %v640 = vmul.f32 %v390, 1.442695
        %v641 = vpow.pop %v640
        %v642 = vmul.f32 %v391, 1.442695
        %v643 = vpow.pop %v642
        %v644 = vmul.f32 %v392, 1.442695
        %v645 = vpow.pop %v644
        %v646 = vmul.f32 %v393, 1.442695
        %v647 = vpow.pop %v646
        %v648 = vmul.f32 %v394, 1.442695
        %v649 = vpow.pop %v648
        %v650 = vmul.f32 %v395, 1.442695
        %v651 = vpow.pop %v650
        %v652 = vadd.f32 %v397, 2.0
        %v653 = vadd.f32 %v399, 2.0
        %v654 = vadd.f32 %v401, 2.0
        %v655 = vadd.f32 %v403, 2.0
        %v656 = vadd.f32 %v405, 2.0
        %v657 = vadd.f32 %v407, 2.0
        %v658 = vadd.f32 %v409, 2.0
        %v659 = vadd.f32 %v411, 2.0
        %v660 = vadd.f32 %v413, 2.0
        %v661 = vadd.f32 %v415, 2.0
        %v662 = vadd.f32 %v417, 2.0
        %v663 = vadd.f32 %v419, 2.0
        %v664 = vadd.f32 %v421, 2.0
        %v665 = vadd.f32 %v423, 2.0
        %v666 = vadd.f32 %v425, 2.0
        %v667 = vadd.f32 %v427, 2.0
        %v668 = vadd.f32 %v429, 2.0
        %v669 = vadd.f32 %v431, 2.0
        %v670 = vadd.f32 %v433, 2.0
        %v671 = vadd.f32 %v435, 2.0
        %v672 = vadd.f32 %v437, 2.0
        %v673 = vadd.f32 %v439, 2.0
        %v674 = vadd.f32 %v441, 2.0
        %v675 = vadd.f32 %v443, 2.0
        %v676 = vadd.f32 %v445, 2.0
        %v677 = vadd.f32 %v447, 2.0
        %v678 = vadd.f32 %v449, 2.0
        %v679 = vadd.f32 %v451, 2.0
        %v680 = vadd.f32 %v453, 2.0
        %v681 = vadd.f32 %v455, 2.0
        %v682 = vadd.f32 %v457, 2.0
        %v683 = vadd.f32 %v459, 2.0
        %v684 = vadd.f32 %v461, 2.0
        %v685 = vadd.f32 %v463, 2.0
        %v686 = vadd.f32 %v465, 2.0
        %v687 = vadd.f32 %v467, 2.0
        %v688 = vadd.f32 %v469, 2.0
        %v689 = vadd.f32 %v471, 2.0
        %v690 = vadd.f32 %v473, 2.0
        %v691 = vadd.f32 %v475, 2.0
        %v692 = vadd.f32 %v477, 2.0
        %v693 = vadd.f32 %v479, 2.0
        %v694 = vadd.f32 %v481, 2.0
        %v695 = vadd.f32 %v483, 2.0
        %v696 = vadd.f32 %v485, 2.0
        %v697 = vadd.f32 %v487, 2.0
        %v698 = vadd.f32 %v489, 2.0
        %v699 = vadd.f32 %v491, 2.0
        %v700 = vadd.f32 %v493, 2.0
        %v701 = vadd.f32 %v495, 2.0
        %v702 = vadd.f32 %v497, 2.0
        %v703 = vadd.f32 %v499, 2.0
        %v704 = vadd.f32 %v501, 2.0
        %v705 = vadd.f32 %v503, 2.0
        %v706 = vadd.f32 %v505, 2.0
        %v707 = vadd.f32 %v507, 2.0
        %v708 = vadd.f32 %v509, 2.0
        %v709 = vadd.f32 %v511, 2.0
        %v710 = vadd.f32 %v513, 2.0
        %v711 = vadd.f32 %v515, 2.0
        %v712 = vadd.f32 %v517, 2.0
        %v713 = vadd.f32 %v519, 2.0
        %v714 = vadd.f32 %v521, 2.0
        %v715 = vadd.f32 %v523, 2.0
        %v716 = vadd.f32 %v525, 2.0
        %v717 = vadd.f32 %v527, 2.0
        %v718 = vadd.f32 %v529, 2.0
        %v719 = vadd.f32 %v531, 2.0
        %v720 = vadd.f32 %v533, 2.0
        %v721 = vadd.f32 %v535, 2.0
        %v722 = vadd.f32 %v537, 2.0
        %v723 = vadd.f32 %v539, 2.0
        %v724 = vadd.f32 %v541, 2.0
        %v725 = vadd.f32 %v543, 2.0
        %v726 = vadd.f32 %v545, 2.0
        %v727 = vadd.f32 %v547, 2.0
        %v728 = vadd.f32 %v549, 2.0
        %v729 = vadd.f32 %v551, 2.0
        %v730 = vadd.f32 %v553, 2.0
        %v731 = vadd.f32 %v555, 2.0
        %v732 = vadd.f32 %v557, 2.0
        %v733 = vadd.f32 %v559, 2.0
        %v734 = vadd.f32 %v561, 2.0
        %v735 = vadd.f32 %v563, 2.0
        %v736 = vadd.f32 %v565, 2.0
        %v737 = vadd.f32 %v567, 2.0
        %v738 = vadd.f32 %v569, 2.0
        %v739 = vadd.f32 %v571, 2.0
        %v740 = vadd.f32 %v573, 2.0
        %v741 = vadd.f32 %v575, 2.0
        %v742 = vadd.f32 %v577, 2.0
        %v743 = vadd.f32 %v579, 2.0
        %v744 = vadd.f32 %v581, 2.0
        %v745 = vadd.f32 %v583, 2.0
        %v746 = vadd.f32 %v585, 2.0
        %v747 = vadd.f32 %v587, 2.0
        %v748 = vadd.f32 %v589, 2.0
        %v749 = vadd.f32 %v591, 2.0
        %v750 = vadd.f32 %v593, 2.0
        %v751 = vadd.f32 %v595, 2.0
        %v752 = vadd.f32 %v597, 2.0
        %v753 = vadd.f32 %v599, 2.0
        %v754 = vadd.f32 %v601, 2.0
        %v755 = vadd.f32 %v603, 2.0
        %v756 = vadd.f32 %v605, 2.0
        %v757 = vadd.f32 %v607, 2.0
        %v758 = vadd.f32 %v609, 2.0
        %v759 = vadd.f32 %v611, 2.0
        %v760 = vadd.f32 %v613, 2.0
        %v761 = vadd.f32 %v615, 2.0
        %v762 = vadd.f32 %v617, 2.0
        %v763 = vadd.f32 %v619, 2.0
        %v764 = vadd.f32 %v621, 2.0
        %v765 = vadd.f32 %v623, 2.0
        %v766 = vadd.f32 %v625, 2.0
        %v767 = vadd.f32 %v627, 2.0
        %v768 = vadd.f32 %v629, 2.0
        %v769 = vadd.f32 %v631, 2.0
        %v770 = vadd.f32 %v633, 2.0
        %v771 = vadd.f32 %v635, 2.0
        %v772 = vadd.f32 %v637, 2.0
        %v773 = vadd.f32 %v639, 2.0
        %v774 = vadd.f32 %v641, 2.0
        %v775 = vadd.f32 %v643, 2.0
        %v776 = vadd.f32 %v645, 2.0
        %v777 = vadd.f32 %v647, 2.0
        %v778 = vadd.f32 %v649, 2.0
        %v779 = vadd.f32 %v651, 2.0
        %v780 = vmul.f32 %v397, %v652
        %v781 = vmul.f32 %v399, %v653
        %v782 = vmul.f32 %v401, %v654
        %v783 = vmul.f32 %v403, %v655
        %v784 = vmul.f32 %v405, %v656
        %v785 = vmul.f32 %v407, %v657
        %v786 = vmul.f32 %v409, %v658
        %v787 = vmul.f32 %v411, %v659
        %v788 = vmul.f32 %v413, %v660
        %v789 = vmul.f32 %v415, %v661
        %v790 = vmul.f32 %v417, %v662
        %v791 = vmul.f32 %v419, %v663
        %v792 = vmul.f32 %v421, %v664
        %v793 = vmul.f32 %v423, %v665
        %v794 = vmul.f32 %v425, %v666
        %v795 = vmul.f32 %v427, %v667
        %v796 = vmul.f32 %v429, %v668
        %v797 = vmul.f32 %v431, %v669
        %v798 = vmul.f32 %v433, %v670
        %v799 = vmul.f32 %v435, %v671
        %v800 = vmul.f32 %v437, %v672
        %v801 = vmul.f32 %v439, %v673
        %v802 = vmul.f32 %v441, %v674
        %v803 = vmul.f32 %v443, %v675
        %v804 = vmul.f32 %v445, %v676
        %v805 = vmul.f32 %v447, %v677
        %v806 = vmul.f32 %v449, %v678
        %v807 = vmul.f32 %v451, %v679
        %v808 = vmul.f32 %v453, %v680
        %v809 = vmul.f32 %v455, %v681
        %v810 = vmul.f32 %v457, %v682
        %v811 = vmul.f32 %v459, %v683
        %v812 = vmul.f32 %v461, %v684
        %v813 = vmul.f32 %v463, %v685
        %v814 = vmul.f32 %v465, %v686
        %v815 = vmul.f32 %v467, %v687
        %v816 = vmul.f32 %v469, %v688
        %v817 = vmul.f32 %v471, %v689
        %v818 = vmul.f32 %v473, %v690
        %v819 = vmul.f32 %v475, %v691
        %v820 = vmul.f32 %v477, %v692
        %v821 = vmul.f32 %v479, %v693
        %v822 = vmul.f32 %v481, %v694
        %v823 = vmul.f32 %v483, %v695
        %v824 = vmul.f32 %v485, %v696
        %v825 = vmul.f32 %v487, %v697
        %v826 = vmul.f32 %v489, %v698
        %v827 = vmul.f32 %v491, %v699
        %v828 = vmul.f32 %v493, %v700
        %v829 = vmul.f32 %v495, %v701
        %v830 = vmul.f32 %v497, %v702
        %v831 = vmul.f32 %v499, %v703
        %v832 = vmul.f32 %v501, %v704
        %v833 = vmul.f32 %v503, %v705
        %v834 = vmul.f32 %v505, %v706
        %v835 = vmul.f32 %v507, %v707
        %v836 = vmul.f32 %v509, %v708
        %v837 = vmul.f32 %v511, %v709
        %v838 = vmul.f32 %v513, %v710
        %v839 = vmul.f32 %v515, %v711
        %v840 = vmul.f32 %v517, %v712
        %v841 = vmul.f32 %v519, %v713
        %v842 = vmul.f32 %v521, %v714
        %v843 = vmul.f32 %v523, %v715
        %v844 = vmul.f32 %v525, %v716
        %v845 = vmul.f32 %v527, %v717
        %v846 = vmul.f32 %v529, %v718
        %v847 = vmul.f32 %v531, %v719
        %v848 = vmul.f32 %v533, %v720
        %v849 = vmul.f32 %v535, %v721
        %v850 = vmul.f32 %v537, %v722
        %v851 = vmul.f32 %v539, %v723
        %v852 = vmul.f32 %v541, %v724
        %v853 = vmul.f32 %v543, %v725
        %v854 = vmul.f32 %v545, %v726
        %v855 = vmul.f32 %v547, %v727
        %v856 = vmul.f32 %v549, %v728
        %v857 = vmul.f32 %v551, %v729
        %v858 = vmul.f32 %v553, %v730
        %v859 = vmul.f32 %v555, %v731
        %v860 = vmul.f32 %v557, %v732
        %v861 = vmul.f32 %v559, %v733
        %v862 = vmul.f32 %v561, %v734
        %v863 = vmul.f32 %v563, %v735
        %v864 = vmul.f32 %v565, %v736
        %v865 = vmul.f32 %v567, %v737
        %v866 = vmul.f32 %v569, %v738
        %v867 = vmul.f32 %v571, %v739
        %v868 = vmul.f32 %v573, %v740
        %v869 = vmul.f32 %v575, %v741
        %v870 = vmul.f32 %v577, %v742
        %v871 = vmul.f32 %v579, %v743
        %v872 = vmul.f32 %v581, %v744
        %v873 = vmul.f32 %v583, %v745
        %v874 = vmul.f32 %v585, %v746
        %v875 = vmul.f32 %v587, %v747
        %v876 = vmul.f32 %v589, %v748
        %v877 = vmul.f32 %v591, %v749
        %v878 = vmul.f32 %v593, %v750
        %v879 = vmul.f32 %v595, %v751
        %v880 = vmul.f32 %v597, %v752
        %v881 = vmul.f32 %v599, %v753
        %v882 = vmul.f32 %v601, %v754
        %v883 = vmul.f32 %v603, %v755
        %v884 = vmul.f32 %v605, %v756
        %v885 = vmul.f32 %v607, %v757
        %v886 = vmul.f32 %v609, %v758
        %v887 = vmul.f32 %v611, %v759
        %v888 = vmul.f32 %v613, %v760
        %v889 = vmul.f32 %v615, %v761
        %v890 = vmul.f32 %v617, %v762
        %v891 = vmul.f32 %v619, %v763
        %v892 = vmul.f32 %v621, %v764
        %v893 = vmul.f32 %v623, %v765
        %v894 = vmul.f32 %v625, %v766
        %v895 = vmul.f32 %v627, %v767
        %v896 = vmul.f32 %v629, %v768
        %v897 = vmul.f32 %v631, %v769
        %v898 = vmul.f32 %v633, %v770
        %v899 = vmul.f32 %v635, %v771
        %v900 = vmul.f32 %v637, %v772
        %v901 = vmul.f32 %v639, %v773
        %v902 = vmul.f32 %v641, %v774
        %v903 = vmul.f32 %v643, %v775
        %v904 = vmul.f32 %v645, %v776
        %v905 = vmul.f32 %v647, %v777
        %v906 = vmul.f32 %v649, %v778
        %v907 = vmul.f32 %v651, %v779
        %v908 = vmul.f32 %v140, %v780
        %v909 = vmul.f32 %v141, %v781
        %v910 = vmul.f32 %v142, %v782
        %v911 = vmul.f32 %v143, %v783
        %v912 = vmul.f32 %v144, %v784
        %v913 = vmul.f32 %v145, %v785
        %v914 = vmul.f32 %v146, %v786
        %v915 = vmul.f32 %v147, %v787
        %v916 = vmul.f32 %v148, %v788
        %v917 = vmul.f32 %v149, %v789
        %v918 = vmul.f32 %v150, %v790
        %v919 = vmul.f32 %v151, %v791
        %v920 = vmul.f32 %v152, %v792
        %v921 = vmul.f32 %v153, %v793
        %v922 = vmul.f32 %v154, %v794
        %v923 = vmul.f32 %v155, %v795
        %v924 = vmul.f32 %v156, %v796
        %v925 = vmul.f32 %v157, %v797
        %v926 = vmul.f32 %v158, %v798
        %v927 = vmul.f32 %v159, %v799
        %v928 = vmul.f32 %v160, %v800
        %v929 = vmul.f32 %v161, %v801
        %v930 = vmul.f32 %v162, %v802
        %v931 = vmul.f32 %v163, %v803
        %v932 = vmul.f32 %v164, %v804
        %v933 = vmul.f32 %v165, %v805
        %v934 = vmul.f32 %v166, %v806
        %v935 = vmul.f32 %v167, %v807
        %v936 = vmul.f32 %v168, %v808
        %v937 = vmul.f32 %v169, %v809
        %v938 = vmul.f32 %v170, %v810
        %v939 = vmul.f32 %v171, %v811
        %v940 = vmul.f32 %v172, %v812
        %v941 = vmul.f32 %v173, %v813
        %v942 = vmul.f32 %v174, %v814
        %v943 = vmul.f32 %v175, %v815
        %v944 = vmul.f32 %v176, %v816
        %v945 = vmul.f32 %v177, %v817
        %v946 = vmul.f32 %v178, %v818
        %v947 = vmul.f32 %v179, %v819
        %v948 = vmul.f32 %v180, %v820
        %v949 = vmul.f32 %v181, %v821
        %v950 = vmul.f32 %v182, %v822
        %v951 = vmul.f32 %v183, %v823
        %v952 = vmul.f32 %v184, %v824
        %v953 = vmul.f32 %v185, %v825
        %v954 = vmul.f32 %v186, %v826
        %v955 = vmul.f32 %v187, %v827
        %v956 = vmul.f32 %v188, %v828
        %v957 = vmul.f32 %v189, %v829
        %v958 = vmul.f32 %v190, %v830
        %v959 = vmul.f32 %v191, %v831
        %v960 = vmul.f32 %v192, %v832
        %v961 = vmul.f32 %v193, %v833
        %v962 = vmul.f32 %v194, %v834
        %v963 = vmul.f32 %v195, %v835
        %v964 = vmul.f32 %v196, %v836
        %v965 = vmul.f32 %v197, %v837
        %v966 = vmul.f32 %v198, %v838
        %v967 = vmul.f32 %v199, %v839
        %v968 = vmul.f32 %v200, %v840
        %v969 = vmul.f32 %v201, %v841
        %v970 = vmul.f32 %v202, %v842
        %v971 = vmul.f32 %v203, %v843
        %v972 = vmul.f32 %v204, %v844
        %v973 = vmul.f32 %v205, %v845
        %v974 = vmul.f32 %v206, %v846
        %v975 = vmul.f32 %v207, %v847
        %v976 = vmul.f32 %v208, %v848
        %v977 = vmul.f32 %v209, %v849
        %v978 = vmul.f32 %v210, %v850
        %v979 = vmul.f32 %v211, %v851
        %v980 = vmul.f32 %v212, %v852
        %v981 = vmul.f32 %v213, %v853
        %v982 = vmul.f32 %v214, %v854
        %v983 = vmul.f32 %v215, %v855
        %v984 = vmul.f32 %v216, %v856
        %v985 = vmul.f32 %v217, %v857
        %v986 = vmul.f32 %v218, %v858
        %v987 = vmul.f32 %v219, %v859
        %v988 = vmul.f32 %v220, %v860
        %v989 = vmul.f32 %v221, %v861
        %v990 = vmul.f32 %v222, %v862
        %v991 = vmul.f32 %v223, %v863
        %v992 = vmul.f32 %v224, %v864
        %v993 = vmul.f32 %v225, %v865
        %v994 = vmul.f32 %v226, %v866
        %v995 = vmul.f32 %v227, %v867
        %v996 = vmul.f32 %v228, %v868
        %v997 = vmul.f32 %v229, %v869
        %v998 = vmul.f32 %v230, %v870
        %v999 = vmul.f32 %v231, %v871
        %v1000 = vmul.f32 %v232, %v872
        %v1001 = vmul.f32 %v233, %v873
        %v1002 = vmul.f32 %v234, %v874
        %v1003 = vmul.f32 %v235, %v875
        %v1004 = vmul.f32 %v236, %v876
        %v1005 = vmul.f32 %v237, %v877
        %v1006 = vmul.f32 %v238, %v878
        %v1007 = vmul.f32 %v239, %v879
        %v1008 = vmul.f32 %v240, %v880
        %v1009 = vmul.f32 %v241, %v881
        %v1010 = vmul.f32 %v242, %v882
        %v1011 = vmul.f32 %v243, %v883
        %v1012 = vmul.f32 %v244, %v884
        %v1013 = vmul.f32 %v245, %v885
        %v1014 = vmul.f32 %v246, %v886
        %v1015 = vmul.f32 %v247, %v887
        %v1016 = vmul.f32 %v248, %v888
        %v1017 = vmul.f32 %v249, %v889
        %v1018 = vmul.f32 %v250, %v890
        %v1019 = vmul.f32 %v251, %v891
        %v1020 = vmul.f32 %v252, %v892
        %v1021 = vmul.f32 %v253, %v893
        %v1022 = vmul.f32 %v254, %v894
        %v1023 = vmul.f32 %v255, %v895
        %v1024 = vmul.f32 %v256, %v896
        %v1025 = vmul.f32 %v257, %v897
        %v1026 = vmul.f32 %v258, %v898
        %v1027 = vmul.f32 %v259, %v899
        %v1028 = vmul.f32 %v260, %v900
        %v1029 = vmul.f32 %v261, %v901
        %v1030 = vmul.f32 %v262, %v902
        %v1031 = vmul.f32 %v263, %v903
        %v1032 = vmul.f32 %v264, %v904
        %v1033 = vmul.f32 %v265, %v905
        %v1034 = vmul.f32 %v266, %v906
        %v1035 = vmul.f32 %v267, %v907
        %v1036 = vadd.f32 %v780, 2.0
        %v1037 = vadd.f32 %v781, 2.0
        %v1038 = vadd.f32 %v782, 2.0
        %v1039 = vadd.f32 %v783, 2.0
        %v1040 = vadd.f32 %v784, 2.0
        %v1041 = vadd.f32 %v785, 2.0
        %v1042 = vadd.f32 %v786, 2.0
        %v1043 = vadd.f32 %v787, 2.0
        %v1044 = vadd.f32 %v788, 2.0
        %v1045 = vadd.f32 %v789, 2.0
        %v1046 = vadd.f32 %v790, 2.0
        %v1047 = vadd.f32 %v791, 2.0
        %v1048 = vadd.f32 %v792, 2.0
        %v1049 = vadd.f32 %v793, 2.0
        %v1050 = vadd.f32 %v794, 2.0
        %v1051 = vadd.f32 %v795, 2.0
        %v1052 = vadd.f32 %v796, 2.0
        %v1053 = vadd.f32 %v797, 2.0
        %v1054 = vadd.f32 %v798, 2.0
        %v1055 = vadd.f32 %v799, 2.0
        %v1056 = vadd.f32 %v800, 2.0
        %v1057 = vadd.f32 %v801, 2.0
        %v1058 = vadd.f32 %v802, 2.0
        %v1059 = vadd.f32 %v803, 2.0
        %v1060 = vadd.f32 %v804, 2.0
        %v1061 = vadd.f32 %v805, 2.0
        %v1062 = vadd.f32 %v806, 2.0
        %v1063 = vadd.f32 %v807, 2.0
        %v1064 = vadd.f32 %v808, 2.0
        %v1065 = vadd.f32 %v809, 2.0
        %v1066 = vadd.f32 %v810, 2.0
        %v1067 = vadd.f32 %v811, 2.0
        %v1068 = vadd.f32 %v812, 2.0
        %v1069 = vadd.f32 %v813, 2.0
        %v1070 = vadd.f32 %v814, 2.0
        %v1071 = vadd.f32 %v815, 2.0
        %v1072 = vadd.f32 %v816, 2.0
        %v1073 = vadd.f32 %v817, 2.0
        %v1074 = vadd.f32 %v818, 2.0
        %v1075 = vadd.f32 %v819, 2.0
        %v1076 = vadd.f32 %v820, 2.0
        %v1077 = vadd.f32 %v821, 2.0
        %v1078 = vadd.f32 %v822, 2.0
        %v1079 = vadd.f32 %v823, 2.0
        %v1080 = vadd.f32 %v824, 2.0
        %v1081 = vadd.f32 %v825, 2.0
        %v1082 = vadd.f32 %v826, 2.0
        %v1083 = vadd.f32 %v827, 2.0
        %v1084 = vadd.f32 %v828, 2.0
        %v1085 = vadd.f32 %v829, 2.0
        %v1086 = vadd.f32 %v830, 2.0
        %v1087 = vadd.f32 %v831, 2.0
        %v1088 = vadd.f32 %v832, 2.0
        %v1089 = vadd.f32 %v833, 2.0
        %v1090 = vadd.f32 %v834, 2.0
        %v1091 = vadd.f32 %v835, 2.0
        %v1092 = vadd.f32 %v836, 2.0
        %v1093 = vadd.f32 %v837, 2.0
        %v1094 = vadd.f32 %v838, 2.0
        %v1095 = vadd.f32 %v839, 2.0
        %v1096 = vadd.f32 %v840, 2.0
        %v1097 = vadd.f32 %v841, 2.0
        %v1098 = vadd.f32 %v842, 2.0
        %v1099 = vadd.f32 %v843, 2.0
        %v1100 = vadd.f32 %v844, 2.0
        %v1101 = vadd.f32 %v845, 2.0
        %v1102 = vadd.f32 %v846, 2.0
        %v1103 = vadd.f32 %v847, 2.0
        %v1104 = vadd.f32 %v848, 2.0
        %v1105 = vadd.f32 %v849, 2.0
        %v1106 = vadd.f32 %v850, 2.0
        %v1107 = vadd.f32 %v851, 2.0
        %v1108 = vadd.f32 %v852, 2.0
        %v1109 = vadd.f32 %v853, 2.0
        %v1110 = vadd.f32 %v854, 2.0
        %v1111 = vadd.f32 %v855, 2.0
        %v1112 = vadd.f32 %v856, 2.0
        %v1113 = vadd.f32 %v857, 2.0
        %v1114 = vadd.f32 %v858, 2.0
        %v1115 = vadd.f32 %v859, 2.0
        %v1116 = vadd.f32 %v860, 2.0
        %v1117 = vadd.f32 %v861, 2.0
        %v1118 = vadd.f32 %v862, 2.0
        %v1119 = vadd.f32 %v863, 2.0
        %v1120 = vadd.f32 %v864, 2.0
        %v1121 = vadd.f32 %v865, 2.0
        %v1122 = vadd.f32 %v866, 2.0
        %v1123 = vadd.f32 %v867, 2.0
        %v1124 = vadd.f32 %v868, 2.0
        %v1125 = vadd.f32 %v869, 2.0
        %v1126 = vadd.f32 %v870, 2.0
        %v1127 = vadd.f32 %v871, 2.0
        %v1128 = vadd.f32 %v872, 2.0
        %v1129 = vadd.f32 %v873, 2.0
        %v1130 = vadd.f32 %v874, 2.0
        %v1131 = vadd.f32 %v875, 2.0
        %v1132 = vadd.f32 %v876, 2.0
        %v1133 = vadd.f32 %v877, 2.0
        %v1134 = vadd.f32 %v878, 2.0
        %v1135 = vadd.f32 %v879, 2.0
        %v1136 = vadd.f32 %v880, 2.0
        %v1137 = vadd.f32 %v881, 2.0
        %v1138 = vadd.f32 %v882, 2.0
        %v1139 = vadd.f32 %v883, 2.0
        %v1140 = vadd.f32 %v884, 2.0
        %v1141 = vadd.f32 %v885, 2.0
        %v1142 = vadd.f32 %v886, 2.0
        %v1143 = vadd.f32 %v887, 2.0
        %v1144 = vadd.f32 %v888, 2.0
        %v1145 = vadd.f32 %v889, 2.0
        %v1146 = vadd.f32 %v890, 2.0
        %v1147 = vadd.f32 %v891, 2.0
        %v1148 = vadd.f32 %v892, 2.0
        %v1149 = vadd.f32 %v893, 2.0
        %v1150 = vadd.f32 %v894, 2.0
        %v1151 = vadd.f32 %v895, 2.0
        %v1152 = vadd.f32 %v896, 2.0
        %v1153 = vadd.f32 %v897, 2.0
        %v1154 = vadd.f32 %v898, 2.0
        %v1155 = vadd.f32 %v899, 2.0
        %v1156 = vadd.f32 %v900, 2.0
        %v1157 = vadd.f32 %v901, 2.0
        %v1158 = vadd.f32 %v902, 2.0
        %v1159 = vadd.f32 %v903, 2.0
        %v1160 = vadd.f32 %v904, 2.0
        %v1161 = vadd.f32 %v905, 2.0
        %v1162 = vadd.f32 %v906, 2.0
        %v1163 = vadd.f32 %v907, 2.0
        %v1164 = vrcp.pop %v1036
        %v1165 = vmul.f32 %v1036, %v1164
        %v1166 = vsub.f32 1.0, %v1165
        %v1167 = vmul.f32 %v1164, %v1166
        %v1168 = vadd.f32 %v1164, %v1167
        %vm1169 = vweird.f32 %v1036
        %vm1170 = vweird.f32 %v1164
        %vm1171 = vmor %vm1169, %vm1170
        %v1172 = vsel %vm1171, %v1164, %v1168
        %v1173 = vand.u32 2147483647, %v1036
        %vm1174 = vcmp.eq.f32.partialorder %v1173, 8.507059e+37
        %v1175 = vand.u32 %v1036, 2147483648
        %v1176 = vor.u32 1.1754944e-38, %v1175
        %v1177 = vsel %vm1174, %v1176, %v1172
        %v1178 = vrcp.pop %v1037
        %v1179 = vmul.f32 %v1037, %v1178
        %v1180 = vsub.f32 1.0, %v1179
        %v1181 = vmul.f32 %v1178, %v1180
        %v1182 = vadd.f32 %v1178, %v1181
        %vm1183 = vweird.f32 %v1037
        %vm1184 = vweird.f32 %v1178
        %vm1185 = vmor %vm1183, %vm1184
        %v1186 = vsel %vm1185, %v1178, %v1182
        %v1187 = vand.u32 2147483647, %v1037
        %vm1188 = vcmp.eq.f32.partialorder %v1187, 8.507059e+37
        %v1189 = vand.u32 %v1037, 2147483648
        %v1190 = vor.u32 1.1754944e-38, %v1189
        %v1191 = vsel %vm1188, %v1190, %v1186
        %v1192 = vrcp.pop %v1038
        %v1193 = vmul.f32 %v1038, %v1192
        %v1194 = vsub.f32 1.0, %v1193
        %v1195 = vmul.f32 %v1192, %v1194
        %v1196 = vadd.f32 %v1192, %v1195
        %vm1197 = vweird.f32 %v1038
        %vm1198 = vweird.f32 %v1192
        %vm1199 = vmor %vm1197, %vm1198
        %v1200 = vsel %vm1199, %v1192, %v1196
        %v1201 = vand.u32 2147483647, %v1038
        %vm1202 = vcmp.eq.f32.partialorder %v1201, 8.507059e+37
        %v1203 = vand.u32 %v1038, 2147483648
        %v1204 = vor.u32 1.1754944e-38, %v1203
        %v1205 = vsel %vm1202, %v1204, %v1200
        %v1206 = vrcp.pop %v1039
        %v1207 = vmul.f32 %v1039, %v1206
        %v1208 = vsub.f32 1.0, %v1207
        %v1209 = vmul.f32 %v1206, %v1208
        %v1210 = vadd.f32 %v1206, %v1209
        %vm1211 = vweird.f32 %v1039
        %vm1212 = vweird.f32 %v1206
        %vm1213 = vmor %vm1211, %vm1212
        %v1214 = vsel %vm1213, %v1206, %v1210
        %v1215 = vand.u32 2147483647, %v1039
        %vm1216 = vcmp.eq.f32.partialorder %v1215, 8.507059e+37
        %v1217 = vand.u32 %v1039, 2147483648
        %v1218 = vor.u32 1.1754944e-38, %v1217
        %v1219 = vsel %vm1216, %v1218, %v1214
        %v1220 = vrcp.pop %v1040
        %v1221 = vmul.f32 %v1040, %v1220
        %v1222 = vsub.f32 1.0, %v1221
        %v1223 = vmul.f32 %v1220, %v1222
        %v1224 = vadd.f32 %v1220, %v1223
        %vm1225 = vweird.f32 %v1040
        %vm1226 = vweird.f32 %v1220
        %vm1227 = vmor %vm1225, %vm1226
        %v1228 = vsel %vm1227, %v1220, %v1224
        %v1229 = vand.u32 2147483647, %v1040
        %vm1230 = vcmp.eq.f32.partialorder %v1229, 8.507059e+37
        %v1231 = vand.u32 %v1040, 2147483648
        %v1232 = vor.u32 1.1754944e-38, %v1231
        %v1233 = vsel %vm1230, %v1232, %v1228
        %v1234 = vrcp.pop %v1041
        %v1235 = vmul.f32 %v1041, %v1234
        %v1236 = vsub.f32 1.0, %v1235
        %v1237 = vmul.f32 %v1234, %v1236
        %v1238 = vadd.f32 %v1234, %v1237
        %vm1239 = vweird.f32 %v1041
        %vm1240 = vweird.f32 %v1234
        %vm1241 = vmor %vm1239, %vm1240
        %v1242 = vsel %vm1241, %v1234, %v1238
        %v1243 = vand.u32 2147483647, %v1041
        %vm1244 = vcmp.eq.f32.partialorder %v1243, 8.507059e+37
        %v1245 = vand.u32 %v1041, 2147483648
        %v1246 = vor.u32 1.1754944e-38, %v1245
        %v1247 = vsel %vm1244, %v1246, %v1242
        %v1248 = vrcp.pop %v1042
        %v1249 = vmul.f32 %v1042, %v1248
        %v1250 = vsub.f32 1.0, %v1249
        %v1251 = vmul.f32 %v1248, %v1250
        %v1252 = vadd.f32 %v1248, %v1251
        %vm1253 = vweird.f32 %v1042
        %vm1254 = vweird.f32 %v1248
        %vm1255 = vmor %vm1253, %vm1254
        %v1256 = vsel %vm1255, %v1248, %v1252
        %v1257 = vand.u32 2147483647, %v1042
        %vm1258 = vcmp.eq.f32.partialorder %v1257, 8.507059e+37
        %v1259 = vand.u32 %v1042, 2147483648
        %v1260 = vor.u32 1.1754944e-38, %v1259
        %v1261 = vsel %vm1258, %v1260, %v1256
        %v1262 = vrcp.pop %v1043
        %v1263 = vmul.f32 %v1043, %v1262
        %v1264 = vsub.f32 1.0, %v1263
        %v1265 = vmul.f32 %v1262, %v1264
        %v1266 = vadd.f32 %v1262, %v1265
        %vm1267 = vweird.f32 %v1043
        %vm1268 = vweird.f32 %v1262
        %vm1269 = vmor %vm1267, %vm1268
        %v1270 = vsel %vm1269, %v1262, %v1266
        %v1271 = vand.u32 2147483647, %v1043
        %vm1272 = vcmp.eq.f32.partialorder %v1271, 8.507059e+37
        %v1273 = vand.u32 %v1043, 2147483648
        %v1274 = vor.u32 1.1754944e-38, %v1273
        %v1275 = vsel %vm1272, %v1274, %v1270
        %v1276 = vrcp.pop %v1044
        %v1277 = vmul.f32 %v1044, %v1276
        %v1278 = vsub.f32 1.0, %v1277
        %v1279 = vmul.f32 %v1276, %v1278
        %v1280 = vadd.f32 %v1276, %v1279
        %vm1281 = vweird.f32 %v1044
        %vm1282 = vweird.f32 %v1276
        %vm1283 = vmor %vm1281, %vm1282
        %v1284 = vsel %vm1283, %v1276, %v1280
        %v1285 = vand.u32 2147483647, %v1044
        %vm1286 = vcmp.eq.f32.partialorder %v1285, 8.507059e+37
        %v1287 = vand.u32 %v1044, 2147483648
        %v1288 = vor.u32 1.1754944e-38, %v1287
        %v1289 = vsel %vm1286, %v1288, %v1284
        %v1290 = vrcp.pop %v1045
        %v1291 = vmul.f32 %v1045, %v1290
        %v1292 = vsub.f32 1.0, %v1291
        %v1293 = vmul.f32 %v1290, %v1292
        %v1294 = vadd.f32 %v1290, %v1293
        %vm1295 = vweird.f32 %v1045
        %vm1296 = vweird.f32 %v1290
        %vm1297 = vmor %vm1295, %vm1296
        %v1298 = vsel %vm1297, %v1290, %v1294
        %v1299 = vand.u32 2147483647, %v1045
        %vm1300 = vcmp.eq.f32.partialorder %v1299, 8.507059e+37
        %v1301 = vand.u32 %v1045, 2147483648
        %v1302 = vor.u32 1.1754944e-38, %v1301
        %v1303 = vsel %vm1300, %v1302, %v1298
        %v1304 = vrcp.pop %v1046
        %v1305 = vmul.f32 %v1046, %v1304
        %v1306 = vsub.f32 1.0, %v1305
        %v1307 = vmul.f32 %v1304, %v1306
        %v1308 = vadd.f32 %v1304, %v1307
        %vm1309 = vweird.f32 %v1046
        %vm1310 = vweird.f32 %v1304
        %vm1311 = vmor %vm1309, %vm1310
        %v1312 = vsel %vm1311, %v1304, %v1308
        %v1313 = vand.u32 2147483647, %v1046
        %vm1314 = vcmp.eq.f32.partialorder %v1313, 8.507059e+37
        %v1315 = vand.u32 %v1046, 2147483648
        %v1316 = vor.u32 1.1754944e-38, %v1315
        %v1317 = vsel %vm1314, %v1316, %v1312
        %v1318 = vrcp.pop %v1047
        %v1319 = vmul.f32 %v1047, %v1318
        %v1320 = vsub.f32 1.0, %v1319
        %v1321 = vmul.f32 %v1318, %v1320
        %v1322 = vadd.f32 %v1318, %v1321
        %vm1323 = vweird.f32 %v1047
        %vm1324 = vweird.f32 %v1318
        %vm1325 = vmor %vm1323, %vm1324
        %v1326 = vsel %vm1325, %v1318, %v1322
        %v1327 = vand.u32 2147483647, %v1047
        %vm1328 = vcmp.eq.f32.partialorder %v1327, 8.507059e+37
        %v1329 = vand.u32 %v1047, 2147483648
        %v1330 = vor.u32 1.1754944e-38, %v1329
        %v1331 = vsel %vm1328, %v1330, %v1326
        %v1332 = vrcp.pop %v1048
        %v1333 = vmul.f32 %v1048, %v1332
        %v1334 = vsub.f32 1.0, %v1333
        %v1335 = vmul.f32 %v1332, %v1334
        %v1336 = vadd.f32 %v1332, %v1335
        %vm1337 = vweird.f32 %v1048
        %vm1338 = vweird.f32 %v1332
        %vm1339 = vmor %vm1337, %vm1338
        %v1340 = vsel %vm1339, %v1332, %v1336
        %v1341 = vand.u32 2147483647, %v1048
        %vm1342 = vcmp.eq.f32.partialorder %v1341, 8.507059e+37
        %v1343 = vand.u32 %v1048, 2147483648
        %v1344 = vor.u32 1.1754944e-38, %v1343
        %v1345 = vsel %vm1342, %v1344, %v1340
        %v1346 = vrcp.pop %v1049
        %v1347 = vmul.f32 %v1049, %v1346
        %v1348 = vsub.f32 1.0, %v1347
        %v1349 = vmul.f32 %v1346, %v1348
        %v1350 = vadd.f32 %v1346, %v1349
        %vm1351 = vweird.f32 %v1049
        %vm1352 = vweird.f32 %v1346
        %vm1353 = vmor %vm1351, %vm1352
        %v1354 = vsel %vm1353, %v1346, %v1350
        %v1355 = vand.u32 2147483647, %v1049
        %vm1356 = vcmp.eq.f32.partialorder %v1355, 8.507059e+37
        %v1357 = vand.u32 %v1049, 2147483648
        %v1358 = vor.u32 1.1754944e-38, %v1357
        %v1359 = vsel %vm1356, %v1358, %v1354
        %v1360 = vrcp.pop %v1050
        %v1361 = vmul.f32 %v1050, %v1360
        %v1362 = vsub.f32 1.0, %v1361
        %v1363 = vmul.f32 %v1360, %v1362
        %v1364 = vadd.f32 %v1360, %v1363
        %vm1365 = vweird.f32 %v1050
        %vm1366 = vweird.f32 %v1360
        %vm1367 = vmor %vm1365, %vm1366
        %v1368 = vsel %vm1367, %v1360, %v1364
        %v1369 = vand.u32 2147483647, %v1050
        %vm1370 = vcmp.eq.f32.partialorder %v1369, 8.507059e+37
        %v1371 = vand.u32 %v1050, 2147483648
        %v1372 = vor.u32 1.1754944e-38, %v1371
        %v1373 = vsel %vm1370, %v1372, %v1368
        %v1374 = vrcp.pop %v1051
        %v1375 = vmul.f32 %v1051, %v1374
        %v1376 = vsub.f32 1.0, %v1375
        %v1377 = vmul.f32 %v1374, %v1376
        %v1378 = vadd.f32 %v1374, %v1377
        %vm1379 = vweird.f32 %v1051
        %vm1380 = vweird.f32 %v1374
        %vm1381 = vmor %vm1379, %vm1380
        %v1382 = vsel %vm1381, %v1374, %v1378
        %v1383 = vand.u32 2147483647, %v1051
        %vm1384 = vcmp.eq.f32.partialorder %v1383, 8.507059e+37
        %v1385 = vand.u32 %v1051, 2147483648
        %v1386 = vor.u32 1.1754944e-38, %v1385
        %v1387 = vsel %vm1384, %v1386, %v1382
        %v1388 = vrcp.pop %v1052
        %v1389 = vmul.f32 %v1052, %v1388
        %v1390 = vsub.f32 1.0, %v1389
        %v1391 = vmul.f32 %v1388, %v1390
        %v1392 = vadd.f32 %v1388, %v1391
        %vm1393 = vweird.f32 %v1052
        %vm1394 = vweird.f32 %v1388
        %vm1395 = vmor %vm1393, %vm1394
        %v1396 = vsel %vm1395, %v1388, %v1392
        %v1397 = vand.u32 2147483647, %v1052
        %vm1398 = vcmp.eq.f32.partialorder %v1397, 8.507059e+37
        %v1399 = vand.u32 %v1052, 2147483648
        %v1400 = vor.u32 1.1754944e-38, %v1399
        %v1401 = vsel %vm1398, %v1400, %v1396
        %v1402 = vrcp.pop %v1053
        %v1403 = vmul.f32 %v1053, %v1402
        %v1404 = vsub.f32 1.0, %v1403
        %v1405 = vmul.f32 %v1402, %v1404
        %v1406 = vadd.f32 %v1402, %v1405
        %vm1407 = vweird.f32 %v1053
        %vm1408 = vweird.f32 %v1402
        %vm1409 = vmor %vm1407, %vm1408
        %v1410 = vsel %vm1409, %v1402, %v1406
        %v1411 = vand.u32 2147483647, %v1053
        %vm1412 = vcmp.eq.f32.partialorder %v1411, 8.507059e+37
        %v1413 = vand.u32 %v1053, 2147483648
        %v1414 = vor.u32 1.1754944e-38, %v1413
        %v1415 = vsel %vm1412, %v1414, %v1410
        %v1416 = vrcp.pop %v1054
        %v1417 = vmul.f32 %v1054, %v1416
        %v1418 = vsub.f32 1.0, %v1417
        %v1419 = vmul.f32 %v1416, %v1418
        %v1420 = vadd.f32 %v1416, %v1419
        %vm1421 = vweird.f32 %v1054
        %vm1422 = vweird.f32 %v1416
        %vm1423 = vmor %vm1421, %vm1422
        %v1424 = vsel %vm1423, %v1416, %v1420
        %v1425 = vand.u32 2147483647, %v1054
        %vm1426 = vcmp.eq.f32.partialorder %v1425, 8.507059e+37
        %v1427 = vand.u32 %v1054, 2147483648
        %v1428 = vor.u32 1.1754944e-38, %v1427
        %v1429 = vsel %vm1426, %v1428, %v1424
        %v1430 = vrcp.pop %v1055
        %v1431 = vmul.f32 %v1055, %v1430
        %v1432 = vsub.f32 1.0, %v1431
        %v1433 = vmul.f32 %v1430, %v1432
        %v1434 = vadd.f32 %v1430, %v1433
        %vm1435 = vweird.f32 %v1055
        %vm1436 = vweird.f32 %v1430
        %vm1437 = vmor %vm1435, %vm1436
        %v1438 = vsel %vm1437, %v1430, %v1434
        %v1439 = vand.u32 2147483647, %v1055
        %vm1440 = vcmp.eq.f32.partialorder %v1439, 8.507059e+37
        %v1441 = vand.u32 %v1055, 2147483648
        %v1442 = vor.u32 1.1754944e-38, %v1441
        %v1443 = vsel %vm1440, %v1442, %v1438
        %v1444 = vrcp.pop %v1056
        %v1445 = vmul.f32 %v1056, %v1444
        %v1446 = vsub.f32 1.0, %v1445
        %v1447 = vmul.f32 %v1444, %v1446
        %v1448 = vadd.f32 %v1444, %v1447
        %vm1449 = vweird.f32 %v1056
        %vm1450 = vweird.f32 %v1444
        %vm1451 = vmor %vm1449, %vm1450
        %v1452 = vsel %vm1451, %v1444, %v1448
        %v1453 = vand.u32 2147483647, %v1056
        %vm1454 = vcmp.eq.f32.partialorder %v1453, 8.507059e+37
        %v1455 = vand.u32 %v1056, 2147483648
        %v1456 = vor.u32 1.1754944e-38, %v1455
        %v1457 = vsel %vm1454, %v1456, %v1452
        %v1458 = vrcp.pop %v1057
        %v1459 = vmul.f32 %v1057, %v1458
        %v1460 = vsub.f32 1.0, %v1459
        %v1461 = vmul.f32 %v1458, %v1460
        %v1462 = vadd.f32 %v1458, %v1461
        %vm1463 = vweird.f32 %v1057
        %vm1464 = vweird.f32 %v1458
        %vm1465 = vmor %vm1463, %vm1464
        %v1466 = vsel %vm1465, %v1458, %v1462
        %v1467 = vand.u32 2147483647, %v1057
        %vm1468 = vcmp.eq.f32.partialorder %v1467, 8.507059e+37
        %v1469 = vand.u32 %v1057, 2147483648
        %v1470 = vor.u32 1.1754944e-38, %v1469
        %v1471 = vsel %vm1468, %v1470, %v1466
        %v1472 = vrcp.pop %v1058
        %v1473 = vmul.f32 %v1058, %v1472
        %v1474 = vsub.f32 1.0, %v1473
        %v1475 = vmul.f32 %v1472, %v1474
        %v1476 = vadd.f32 %v1472, %v1475
        %vm1477 = vweird.f32 %v1058
        %vm1478 = vweird.f32 %v1472
        %vm1479 = vmor %vm1477, %vm1478
        %v1480 = vsel %vm1479, %v1472, %v1476
        %v1481 = vand.u32 2147483647, %v1058
        %vm1482 = vcmp.eq.f32.partialorder %v1481, 8.507059e+37
        %v1483 = vand.u32 %v1058, 2147483648
        %v1484 = vor.u32 1.1754944e-38, %v1483
        %v1485 = vsel %vm1482, %v1484, %v1480
        %v1486 = vrcp.pop %v1059
        %v1487 = vmul.f32 %v1059, %v1486
        %v1488 = vsub.f32 1.0, %v1487
        %v1489 = vmul.f32 %v1486, %v1488
        %v1490 = vadd.f32 %v1486, %v1489
        %vm1491 = vweird.f32 %v1059
        %vm1492 = vweird.f32 %v1486
        %vm1493 = vmor %vm1491, %vm1492
        %v1494 = vsel %vm1493, %v1486, %v1490
        %v1495 = vand.u32 2147483647, %v1059
        %vm1496 = vcmp.eq.f32.partialorder %v1495, 8.507059e+37
        %v1497 = vand.u32 %v1059, 2147483648
        %v1498 = vor.u32 1.1754944e-38, %v1497
        %v1499 = vsel %vm1496, %v1498, %v1494
        %v1500 = vrcp.pop %v1060
        %v1501 = vmul.f32 %v1060, %v1500
        %v1502 = vsub.f32 1.0, %v1501
        %v1503 = vmul.f32 %v1500, %v1502
        %v1504 = vadd.f32 %v1500, %v1503
        %vm1505 = vweird.f32 %v1060
        %vm1506 = vweird.f32 %v1500
        %vm1507 = vmor %vm1505, %vm1506
        %v1508 = vsel %vm1507, %v1500, %v1504
        %v1509 = vand.u32 2147483647, %v1060
        %vm1510 = vcmp.eq.f32.partialorder %v1509, 8.507059e+37
        %v1511 = vand.u32 %v1060, 2147483648
        %v1512 = vor.u32 1.1754944e-38, %v1511
        %v1513 = vsel %vm1510, %v1512, %v1508
        %v1514 = vrcp.pop %v1061
        %v1515 = vmul.f32 %v1061, %v1514
        %v1516 = vsub.f32 1.0, %v1515
        %v1517 = vmul.f32 %v1514, %v1516
        %v1518 = vadd.f32 %v1514, %v1517
        %vm1519 = vweird.f32 %v1061
        %vm1520 = vweird.f32 %v1514
        %vm1521 = vmor %vm1519, %vm1520
        %v1522 = vsel %vm1521, %v1514, %v1518
        %v1523 = vand.u32 2147483647, %v1061
        %vm1524 = vcmp.eq.f32.partialorder %v1523, 8.507059e+37
        %v1525 = vand.u32 %v1061, 2147483648
        %v1526 = vor.u32 1.1754944e-38, %v1525
        %v1527 = vsel %vm1524, %v1526, %v1522
        %v1528 = vrcp.pop %v1062
        %v1529 = vmul.f32 %v1062, %v1528
        %v1530 = vsub.f32 1.0, %v1529
        %v1531 = vmul.f32 %v1528, %v1530
        %v1532 = vadd.f32 %v1528, %v1531
        %vm1533 = vweird.f32 %v1062
        %vm1534 = vweird.f32 %v1528
        %vm1535 = vmor %vm1533, %vm1534
        %v1536 = vsel %vm1535, %v1528, %v1532
        %v1537 = vand.u32 2147483647, %v1062
        %vm1538 = vcmp.eq.f32.partialorder %v1537, 8.507059e+37
        %v1539 = vand.u32 %v1062, 2147483648
        %v1540 = vor.u32 1.1754944e-38, %v1539
        %v1541 = vsel %vm1538, %v1540, %v1536
        %v1542 = vrcp.pop %v1063
        %v1543 = vmul.f32 %v1063, %v1542
        %v1544 = vsub.f32 1.0, %v1543
        %v1545 = vmul.f32 %v1542, %v1544
        %v1546 = vadd.f32 %v1542, %v1545
        %vm1547 = vweird.f32 %v1063
        %vm1548 = vweird.f32 %v1542
        %vm1549 = vmor %vm1547, %vm1548
        %v1550 = vsel %vm1549, %v1542, %v1546
        %v1551 = vand.u32 2147483647, %v1063
        %vm1552 = vcmp.eq.f32.partialorder %v1551, 8.507059e+37
        %v1553 = vand.u32 %v1063, 2147483648
        %v1554 = vor.u32 1.1754944e-38, %v1553
        %v1555 = vsel %vm1552, %v1554, %v1550
        %v1556 = vrcp.pop %v1064
        %v1557 = vmul.f32 %v1064, %v1556
        %v1558 = vsub.f32 1.0, %v1557
        %v1559 = vmul.f32 %v1556, %v1558
        %v1560 = vadd.f32 %v1556, %v1559
        %vm1561 = vweird.f32 %v1064
        %vm1562 = vweird.f32 %v1556
        %vm1563 = vmor %vm1561, %vm1562
        %v1564 = vsel %vm1563, %v1556, %v1560
        %v1565 = vand.u32 2147483647, %v1064
        %vm1566 = vcmp.eq.f32.partialorder %v1565, 8.507059e+37
        %v1567 = vand.u32 %v1064, 2147483648
        %v1568 = vor.u32 1.1754944e-38, %v1567
        %v1569 = vsel %vm1566, %v1568, %v1564
        %v1570 = vrcp.pop %v1065
        %v1571 = vmul.f32 %v1065, %v1570
        %v1572 = vsub.f32 1.0, %v1571
        %v1573 = vmul.f32 %v1570, %v1572
        %v1574 = vadd.f32 %v1570, %v1573
        %vm1575 = vweird.f32 %v1065
        %vm1576 = vweird.f32 %v1570
        %vm1577 = vmor %vm1575, %vm1576
        %v1578 = vsel %vm1577, %v1570, %v1574
        %v1579 = vand.u32 2147483647, %v1065
        %vm1580 = vcmp.eq.f32.partialorder %v1579, 8.507059e+37
        %v1581 = vand.u32 %v1065, 2147483648
        %v1582 = vor.u32 1.1754944e-38, %v1581
        %v1583 = vsel %vm1580, %v1582, %v1578
        %v1584 = vrcp.pop %v1066
        %v1585 = vmul.f32 %v1066, %v1584
        %v1586 = vsub.f32 1.0, %v1585
        %v1587 = vmul.f32 %v1584, %v1586
        %v1588 = vadd.f32 %v1584, %v1587
        %vm1589 = vweird.f32 %v1066
        %vm1590 = vweird.f32 %v1584
        %vm1591 = vmor %vm1589, %vm1590
        %v1592 = vsel %vm1591, %v1584, %v1588
        %v1593 = vand.u32 2147483647, %v1066
        %vm1594 = vcmp.eq.f32.partialorder %v1593, 8.507059e+37
        %v1595 = vand.u32 %v1066, 2147483648
        %v1596 = vor.u32 1.1754944e-38, %v1595
        %v1597 = vsel %vm1594, %v1596, %v1592
        %v1598 = vrcp.pop %v1067
        %v1599 = vmul.f32 %v1067, %v1598
        %v1600 = vsub.f32 1.0, %v1599
        %v1601 = vmul.f32 %v1598, %v1600
        %v1602 = vadd.f32 %v1598, %v1601
        %vm1603 = vweird.f32 %v1067
        %vm1604 = vweird.f32 %v1598
        %vm1605 = vmor %vm1603, %vm1604
        %v1606 = vsel %vm1605, %v1598, %v1602
        %v1607 = vand.u32 2147483647, %v1067
        %vm1608 = vcmp.eq.f32.partialorder %v1607, 8.507059e+37
        %v1609 = vand.u32 %v1067, 2147483648
        %v1610 = vor.u32 1.1754944e-38, %v1609
        %v1611 = vsel %vm1608, %v1610, %v1606
        %v1612 = vrcp.pop %v1068
        %v1613 = vmul.f32 %v1068, %v1612
        %v1614 = vsub.f32 1.0, %v1613
        %v1615 = vmul.f32 %v1612, %v1614
        %v1616 = vadd.f32 %v1612, %v1615
        %vm1617 = vweird.f32 %v1068
        %vm1618 = vweird.f32 %v1612
        %vm1619 = vmor %vm1617, %vm1618
        %v1620 = vsel %vm1619, %v1612, %v1616
        %v1621 = vand.u32 2147483647, %v1068
        %vm1622 = vcmp.eq.f32.partialorder %v1621, 8.507059e+37
        %v1623 = vand.u32 %v1068, 2147483648
        %v1624 = vor.u32 1.1754944e-38, %v1623
        %v1625 = vsel %vm1622, %v1624, %v1620
        %v1626 = vrcp.pop %v1069
        %v1627 = vmul.f32 %v1069, %v1626
        %v1628 = vsub.f32 1.0, %v1627
        %v1629 = vmul.f32 %v1626, %v1628
        %v1630 = vadd.f32 %v1626, %v1629
        %vm1631 = vweird.f32 %v1069
        %vm1632 = vweird.f32 %v1626
        %vm1633 = vmor %vm1631, %vm1632
        %v1634 = vsel %vm1633, %v1626, %v1630
        %v1635 = vand.u32 2147483647, %v1069
        %vm1636 = vcmp.eq.f32.partialorder %v1635, 8.507059e+37
        %v1637 = vand.u32 %v1069, 2147483648
        %v1638 = vor.u32 1.1754944e-38, %v1637
        %v1639 = vsel %vm1636, %v1638, %v1634
        %v1640 = vrcp.pop %v1070
        %v1641 = vmul.f32 %v1070, %v1640
        %v1642 = vsub.f32 1.0, %v1641
        %v1643 = vmul.f32 %v1640, %v1642
        %v1644 = vadd.f32 %v1640, %v1643
        %vm1645 = vweird.f32 %v1070
        %vm1646 = vweird.f32 %v1640
        %vm1647 = vmor %vm1645, %vm1646
        %v1648 = vsel %vm1647, %v1640, %v1644
        %v1649 = vand.u32 2147483647, %v1070
        %vm1650 = vcmp.eq.f32.partialorder %v1649, 8.507059e+37
        %v1651 = vand.u32 %v1070, 2147483648
        %v1652 = vor.u32 1.1754944e-38, %v1651
        %v1653 = vsel %vm1650, %v1652, %v1648
        %v1654 = vrcp.pop %v1071
        %v1655 = vmul.f32 %v1071, %v1654
        %v1656 = vsub.f32 1.0, %v1655
        %v1657 = vmul.f32 %v1654, %v1656
        %v1658 = vadd.f32 %v1654, %v1657
        %vm1659 = vweird.f32 %v1071
        %vm1660 = vweird.f32 %v1654
        %vm1661 = vmor %vm1659, %vm1660
        %v1662 = vsel %vm1661, %v1654, %v1658
        %v1663 = vand.u32 2147483647, %v1071
        %vm1664 = vcmp.eq.f32.partialorder %v1663, 8.507059e+37
        %v1665 = vand.u32 %v1071, 2147483648
        %v1666 = vor.u32 1.1754944e-38, %v1665
        %v1667 = vsel %vm1664, %v1666, %v1662
        %v1668 = vrcp.pop %v1072
        %v1669 = vmul.f32 %v1072, %v1668
        %v1670 = vsub.f32 1.0, %v1669
        %v1671 = vmul.f32 %v1668, %v1670
        %v1672 = vadd.f32 %v1668, %v1671
        %vm1673 = vweird.f32 %v1072
        %vm1674 = vweird.f32 %v1668
        %vm1675 = vmor %vm1673, %vm1674
        %v1676 = vsel %vm1675, %v1668, %v1672
        %v1677 = vand.u32 2147483647, %v1072
        %vm1678 = vcmp.eq.f32.partialorder %v1677, 8.507059e+37
        %v1679 = vand.u32 %v1072, 2147483648
        %v1680 = vor.u32 1.1754944e-38, %v1679
        %v1681 = vsel %vm1678, %v1680, %v1676
        %v1682 = vrcp.pop %v1073
        %v1683 = vmul.f32 %v1073, %v1682
        %v1684 = vsub.f32 1.0, %v1683
        %v1685 = vmul.f32 %v1682, %v1684
        %v1686 = vadd.f32 %v1682, %v1685
        %vm1687 = vweird.f32 %v1073
        %vm1688 = vweird.f32 %v1682
        %vm1689 = vmor %vm1687, %vm1688
        %v1690 = vsel %vm1689, %v1682, %v1686
        %v1691 = vand.u32 2147483647, %v1073
        %vm1692 = vcmp.eq.f32.partialorder %v1691, 8.507059e+37
        %v1693 = vand.u32 %v1073, 2147483648
        %v1694 = vor.u32 1.1754944e-38, %v1693
        %v1695 = vsel %vm1692, %v1694, %v1690
        %v1696 = vrcp.pop %v1074
        %v1697 = vmul.f32 %v1074, %v1696
        %v1698 = vsub.f32 1.0, %v1697
        %v1699 = vmul.f32 %v1696, %v1698
        %v1700 = vadd.f32 %v1696, %v1699
        %vm1701 = vweird.f32 %v1074
        %vm1702 = vweird.f32 %v1696
        %vm1703 = vmor %vm1701, %vm1702
        %v1704 = vsel %vm1703, %v1696, %v1700
        %v1705 = vand.u32 2147483647, %v1074
        %vm1706 = vcmp.eq.f32.partialorder %v1705, 8.507059e+37
        %v1707 = vand.u32 %v1074, 2147483648
        %v1708 = vor.u32 1.1754944e-38, %v1707
        %v1709 = vsel %vm1706, %v1708, %v1704
        %v1710 = vrcp.pop %v1075
        %v1711 = vmul.f32 %v1075, %v1710
        %v1712 = vsub.f32 1.0, %v1711
        %v1713 = vmul.f32 %v1710, %v1712
        %v1714 = vadd.f32 %v1710, %v1713
        %vm1715 = vweird.f32 %v1075
        %vm1716 = vweird.f32 %v1710
        %vm1717 = vmor %vm1715, %vm1716
        %v1718 = vsel %vm1717, %v1710, %v1714
        %v1719 = vand.u32 2147483647, %v1075
        %vm1720 = vcmp.eq.f32.partialorder %v1719, 8.507059e+37
        %v1721 = vand.u32 %v1075, 2147483648
        %v1722 = vor.u32 1.1754944e-38, %v1721
        %v1723 = vsel %vm1720, %v1722, %v1718
        %v1724 = vrcp.pop %v1076
        %v1725 = vmul.f32 %v1076, %v1724
        %v1726 = vsub.f32 1.0, %v1725
        %v1727 = vmul.f32 %v1724, %v1726
        %v1728 = vadd.f32 %v1724, %v1727
        %vm1729 = vweird.f32 %v1076
        %vm1730 = vweird.f32 %v1724
        %vm1731 = vmor %vm1729, %vm1730
        %v1732 = vsel %vm1731, %v1724, %v1728
        %v1733 = vand.u32 2147483647, %v1076
        %vm1734 = vcmp.eq.f32.partialorder %v1733, 8.507059e+37
        %v1735 = vand.u32 %v1076, 2147483648
        %v1736 = vor.u32 1.1754944e-38, %v1735
        %v1737 = vsel %vm1734, %v1736, %v1732
        %v1738 = vrcp.pop %v1077
        %v1739 = vmul.f32 %v1077, %v1738
        %v1740 = vsub.f32 1.0, %v1739
        %v1741 = vmul.f32 %v1738, %v1740
        %v1742 = vadd.f32 %v1738, %v1741
        %vm1743 = vweird.f32 %v1077
        %vm1744 = vweird.f32 %v1738
        %vm1745 = vmor %vm1743, %vm1744
        %v1746 = vsel %vm1745, %v1738, %v1742
        %v1747 = vand.u32 2147483647, %v1077
        %vm1748 = vcmp.eq.f32.partialorder %v1747, 8.507059e+37
        %v1749 = vand.u32 %v1077, 2147483648
        %v1750 = vor.u32 1.1754944e-38, %v1749
        %v1751 = vsel %vm1748, %v1750, %v1746
        %v1752 = vrcp.pop %v1078
        %v1753 = vmul.f32 %v1078, %v1752
        %v1754 = vsub.f32 1.0, %v1753
        %v1755 = vmul.f32 %v1752, %v1754
        %v1756 = vadd.f32 %v1752, %v1755
        %vm1757 = vweird.f32 %v1078
        %vm1758 = vweird.f32 %v1752
        %vm1759 = vmor %vm1757, %vm1758
        %v1760 = vsel %vm1759, %v1752, %v1756
        %v1761 = vand.u32 2147483647, %v1078
        %vm1762 = vcmp.eq.f32.partialorder %v1761, 8.507059e+37
        %v1763 = vand.u32 %v1078, 2147483648
        %v1764 = vor.u32 1.1754944e-38, %v1763
        %v1765 = vsel %vm1762, %v1764, %v1760
        %v1766 = vrcp.pop %v1079
        %v1767 = vmul.f32 %v1079, %v1766
        %v1768 = vsub.f32 1.0, %v1767
        %v1769 = vmul.f32 %v1766, %v1768
        %v1770 = vadd.f32 %v1766, %v1769
        %vm1771 = vweird.f32 %v1079
        %vm1772 = vweird.f32 %v1766
        %vm1773 = vmor %vm1771, %vm1772
        %v1774 = vsel %vm1773, %v1766, %v1770
        %v1775 = vand.u32 2147483647, %v1079
        %vm1776 = vcmp.eq.f32.partialorder %v1775, 8.507059e+37
        %v1777 = vand.u32 %v1079, 2147483648
        %v1778 = vor.u32 1.1754944e-38, %v1777
        %v1779 = vsel %vm1776, %v1778, %v1774
        %v1780 = vrcp.pop %v1080
        %v1781 = vmul.f32 %v1080, %v1780
        %v1782 = vsub.f32 1.0, %v1781
        %v1783 = vmul.f32 %v1780, %v1782
        %v1784 = vadd.f32 %v1780, %v1783
        %vm1785 = vweird.f32 %v1080
        %vm1786 = vweird.f32 %v1780
        %vm1787 = vmor %vm1785, %vm1786
        %v1788 = vsel %vm1787, %v1780, %v1784
        %v1789 = vand.u32 2147483647, %v1080
        %vm1790 = vcmp.eq.f32.partialorder %v1789, 8.507059e+37
        %v1791 = vand.u32 %v1080, 2147483648
        %v1792 = vor.u32 1.1754944e-38, %v1791
        %v1793 = vsel %vm1790, %v1792, %v1788
        %v1794 = vrcp.pop %v1081
        %v1795 = vmul.f32 %v1081, %v1794
        %v1796 = vsub.f32 1.0, %v1795
        %v1797 = vmul.f32 %v1794, %v1796
        %v1798 = vadd.f32 %v1794, %v1797
        %vm1799 = vweird.f32 %v1081
        %vm1800 = vweird.f32 %v1794
        %vm1801 = vmor %vm1799, %vm1800
        %v1802 = vsel %vm1801, %v1794, %v1798
        %v1803 = vand.u32 2147483647, %v1081
        %vm1804 = vcmp.eq.f32.partialorder %v1803, 8.507059e+37
        %v1805 = vand.u32 %v1081, 2147483648
        %v1806 = vor.u32 1.1754944e-38, %v1805
        %v1807 = vsel %vm1804, %v1806, %v1802
        %v1808 = vrcp.pop %v1082
        %v1809 = vmul.f32 %v1082, %v1808
        %v1810 = vsub.f32 1.0, %v1809
        %v1811 = vmul.f32 %v1808, %v1810
        %v1812 = vadd.f32 %v1808, %v1811
        %vm1813 = vweird.f32 %v1082
        %vm1814 = vweird.f32 %v1808
        %vm1815 = vmor %vm1813, %vm1814
        %v1816 = vsel %vm1815, %v1808, %v1812
        %v1817 = vand.u32 2147483647, %v1082
        %vm1818 = vcmp.eq.f32.partialorder %v1817, 8.507059e+37
        %v1819 = vand.u32 %v1082, 2147483648
        %v1820 = vor.u32 1.1754944e-38, %v1819
        %v1821 = vsel %vm1818, %v1820, %v1816
        %v1822 = vrcp.pop %v1083
        %v1823 = vmul.f32 %v1083, %v1822
        %v1824 = vsub.f32 1.0, %v1823
        %v1825 = vmul.f32 %v1822, %v1824
        %v1826 = vadd.f32 %v1822, %v1825
        %vm1827 = vweird.f32 %v1083
        %vm1828 = vweird.f32 %v1822
        %vm1829 = vmor %vm1827, %vm1828
        %v1830 = vsel %vm1829, %v1822, %v1826
        %v1831 = vand.u32 2147483647, %v1083
        %vm1832 = vcmp.eq.f32.partialorder %v1831, 8.507059e+37
        %v1833 = vand.u32 %v1083, 2147483648
        %v1834 = vor.u32 1.1754944e-38, %v1833
        %v1835 = vsel %vm1832, %v1834, %v1830
        %v1836 = vrcp.pop %v1084
        %v1837 = vmul.f32 %v1084, %v1836
        %v1838 = vsub.f32 1.0, %v1837
        %v1839 = vmul.f32 %v1836, %v1838
        %v1840 = vadd.f32 %v1836, %v1839
        %vm1841 = vweird.f32 %v1084
        %vm1842 = vweird.f32 %v1836
        %vm1843 = vmor %vm1841, %vm1842
        %v1844 = vsel %vm1843, %v1836, %v1840
        %v1845 = vand.u32 2147483647, %v1084
        %vm1846 = vcmp.eq.f32.partialorder %v1845, 8.507059e+37
        %v1847 = vand.u32 %v1084, 2147483648
        %v1848 = vor.u32 1.1754944e-38, %v1847
        %v1849 = vsel %vm1846, %v1848, %v1844
        %v1850 = vrcp.pop %v1085
        %v1851 = vmul.f32 %v1085, %v1850
        %v1852 = vsub.f32 1.0, %v1851
        %v1853 = vmul.f32 %v1850, %v1852
        %v1854 = vadd.f32 %v1850, %v1853
        %vm1855 = vweird.f32 %v1085
        %vm1856 = vweird.f32 %v1850
        %vm1857 = vmor %vm1855, %vm1856
        %v1858 = vsel %vm1857, %v1850, %v1854
        %v1859 = vand.u32 2147483647, %v1085
        %vm1860 = vcmp.eq.f32.partialorder %v1859, 8.507059e+37
        %v1861 = vand.u32 %v1085, 2147483648
        %v1862 = vor.u32 1.1754944e-38, %v1861
        %v1863 = vsel %vm1860, %v1862, %v1858
        %v1864 = vrcp.pop %v1086
        %v1865 = vmul.f32 %v1086, %v1864
        %v1866 = vsub.f32 1.0, %v1865
        %v1867 = vmul.f32 %v1864, %v1866
        %v1868 = vadd.f32 %v1864, %v1867
        %vm1869 = vweird.f32 %v1086
        %vm1870 = vweird.f32 %v1864
        %vm1871 = vmor %vm1869, %vm1870
        %v1872 = vsel %vm1871, %v1864, %v1868
        %v1873 = vand.u32 2147483647, %v1086
        %vm1874 = vcmp.eq.f32.partialorder %v1873, 8.507059e+37
        %v1875 = vand.u32 %v1086, 2147483648
        %v1876 = vor.u32 1.1754944e-38, %v1875
        %v1877 = vsel %vm1874, %v1876, %v1872
        %v1878 = vrcp.pop %v1087
        %v1879 = vmul.f32 %v1087, %v1878
        %v1880 = vsub.f32 1.0, %v1879
        %v1881 = vmul.f32 %v1878, %v1880
        %v1882 = vadd.f32 %v1878, %v1881
        %vm1883 = vweird.f32 %v1087
        %vm1884 = vweird.f32 %v1878
        %vm1885 = vmor %vm1883, %vm1884
        %v1886 = vsel %vm1885, %v1878, %v1882
        %v1887 = vand.u32 2147483647, %v1087
        %vm1888 = vcmp.eq.f32.partialorder %v1887, 8.507059e+37
        %v1889 = vand.u32 %v1087, 2147483648
        %v1890 = vor.u32 1.1754944e-38, %v1889
        %v1891 = vsel %vm1888, %v1890, %v1886
        %v1892 = vrcp.pop %v1088
        %v1893 = vmul.f32 %v1088, %v1892
        %v1894 = vsub.f32 1.0, %v1893
        %v1895 = vmul.f32 %v1892, %v1894
        %v1896 = vadd.f32 %v1892, %v1895
        %vm1897 = vweird.f32 %v1088
        %vm1898 = vweird.f32 %v1892
        %vm1899 = vmor %vm1897, %vm1898
        %v1900 = vsel %vm1899, %v1892, %v1896
        %v1901 = vand.u32 2147483647, %v1088
        %vm1902 = vcmp.eq.f32.partialorder %v1901, 8.507059e+37
        %v1903 = vand.u32 %v1088, 2147483648
        %v1904 = vor.u32 1.1754944e-38, %v1903
        %v1905 = vsel %vm1902, %v1904, %v1900
        %v1906 = vrcp.pop %v1089
        %v1907 = vmul.f32 %v1089, %v1906
        %v1908 = vsub.f32 1.0, %v1907
        %v1909 = vmul.f32 %v1906, %v1908
        %v1910 = vadd.f32 %v1906, %v1909
        %vm1911 = vweird.f32 %v1089
        %vm1912 = vweird.f32 %v1906
        %vm1913 = vmor %vm1911, %vm1912
        %v1914 = vsel %vm1913, %v1906, %v1910
        %v1915 = vand.u32 2147483647, %v1089
        %vm1916 = vcmp.eq.f32.partialorder %v1915, 8.507059e+37
        %v1917 = vand.u32 %v1089, 2147483648
        %v1918 = vor.u32 1.1754944e-38, %v1917
        %v1919 = vsel %vm1916, %v1918, %v1914
        %v1920 = vrcp.pop %v1090
        %v1921 = vmul.f32 %v1090, %v1920
        %v1922 = vsub.f32 1.0, %v1921
        %v1923 = vmul.f32 %v1920, %v1922
        %v1924 = vadd.f32 %v1920, %v1923
        %vm1925 = vweird.f32 %v1090
        %vm1926 = vweird.f32 %v1920
        %vm1927 = vmor %vm1925, %vm1926
        %v1928 = vsel %vm1927, %v1920, %v1924
        %v1929 = vand.u32 2147483647, %v1090
        %vm1930 = vcmp.eq.f32.partialorder %v1929, 8.507059e+37
        %v1931 = vand.u32 %v1090, 2147483648
        %v1932 = vor.u32 1.1754944e-38, %v1931
        %v1933 = vsel %vm1930, %v1932, %v1928
        %v1934 = vrcp.pop %v1091
        %v1935 = vmul.f32 %v1091, %v1934
        %v1936 = vsub.f32 1.0, %v1935
        %v1937 = vmul.f32 %v1934, %v1936
        %v1938 = vadd.f32 %v1934, %v1937
        %vm1939 = vweird.f32 %v1091
        %vm1940 = vweird.f32 %v1934
        %vm1941 = vmor %vm1939, %vm1940
        %v1942 = vsel %vm1941, %v1934, %v1938
        %v1943 = vand.u32 2147483647, %v1091
        %vm1944 = vcmp.eq.f32.partialorder %v1943, 8.507059e+37
        %v1945 = vand.u32 %v1091, 2147483648
        %v1946 = vor.u32 1.1754944e-38, %v1945
        %v1947 = vsel %vm1944, %v1946, %v1942
        %v1948 = vrcp.pop %v1092
        %v1949 = vmul.f32 %v1092, %v1948
        %v1950 = vsub.f32 1.0, %v1949
        %v1951 = vmul.f32 %v1948, %v1950
        %v1952 = vadd.f32 %v1948, %v1951
        %vm1953 = vweird.f32 %v1092
        %vm1954 = vweird.f32 %v1948
        %vm1955 = vmor %vm1953, %vm1954
        %v1956 = vsel %vm1955, %v1948, %v1952
        %v1957 = vand.u32 2147483647, %v1092
        %vm1958 = vcmp.eq.f32.partialorder %v1957, 8.507059e+37
        %v1959 = vand.u32 %v1092, 2147483648
        %v1960 = vor.u32 1.1754944e-38, %v1959
        %v1961 = vsel %vm1958, %v1960, %v1956
        %v1962 = vrcp.pop %v1093
        %v1963 = vmul.f32 %v1093, %v1962
        %v1964 = vsub.f32 1.0, %v1963
        %v1965 = vmul.f32 %v1962, %v1964
        %v1966 = vadd.f32 %v1962, %v1965
        %vm1967 = vweird.f32 %v1093
        %vm1968 = vweird.f32 %v1962
        %vm1969 = vmor %vm1967, %vm1968
        %v1970 = vsel %vm1969, %v1962, %v1966
        %v1971 = vand.u32 2147483647, %v1093
        %vm1972 = vcmp.eq.f32.partialorder %v1971, 8.507059e+37
        %v1973 = vand.u32 %v1093, 2147483648
        %v1974 = vor.u32 1.1754944e-38, %v1973
        %v1975 = vsel %vm1972, %v1974, %v1970
        %v1976 = vrcp.pop %v1094
        %v1977 = vmul.f32 %v1094, %v1976
        %v1978 = vsub.f32 1.0, %v1977
        %v1979 = vmul.f32 %v1976, %v1978
        %v1980 = vadd.f32 %v1976, %v1979
        %vm1981 = vweird.f32 %v1094
        %vm1982 = vweird.f32 %v1976
        %vm1983 = vmor %vm1981, %vm1982
        %v1984 = vsel %vm1983, %v1976, %v1980
        %v1985 = vand.u32 2147483647, %v1094
        %vm1986 = vcmp.eq.f32.partialorder %v1985, 8.507059e+37
        %v1987 = vand.u32 %v1094, 2147483648
        %v1988 = vor.u32 1.1754944e-38, %v1987
        %v1989 = vsel %vm1986, %v1988, %v1984
        %v1990 = vrcp.pop %v1095
        %v1991 = vmul.f32 %v1095, %v1990
        %v1992 = vsub.f32 1.0, %v1991
        %v1993 = vmul.f32 %v1990, %v1992
        %v1994 = vadd.f32 %v1990, %v1993
        %vm1995 = vweird.f32 %v1095
        %vm1996 = vweird.f32 %v1990
        %vm1997 = vmor %vm1995, %vm1996
        %v1998 = vsel %vm1997, %v1990, %v1994
        %v1999 = vand.u32 2147483647, %v1095
        %vm2000 = vcmp.eq.f32.partialorder %v1999, 8.507059e+37
        %v2001 = vand.u32 %v1095, 2147483648
        %v2002 = vor.u32 1.1754944e-38, %v2001
        %v2003 = vsel %vm2000, %v2002, %v1998
        %v2004 = vrcp.pop %v1096
        %v2005 = vmul.f32 %v1096, %v2004
        %v2006 = vsub.f32 1.0, %v2005
        %v2007 = vmul.f32 %v2004, %v2006
        %v2008 = vadd.f32 %v2004, %v2007
        %vm2009 = vweird.f32 %v1096
        %vm2010 = vweird.f32 %v2004
        %vm2011 = vmor %vm2009, %vm2010
        %v2012 = vsel %vm2011, %v2004, %v2008
        %v2013 = vand.u32 2147483647, %v1096
        %vm2014 = vcmp.eq.f32.partialorder %v2013, 8.507059e+37
        %v2015 = vand.u32 %v1096, 2147483648
        %v2016 = vor.u32 1.1754944e-38, %v2015
        %v2017 = vsel %vm2014, %v2016, %v2012
        %v2018 = vrcp.pop %v1097
        %v2019 = vmul.f32 %v1097, %v2018
        %v2020 = vsub.f32 1.0, %v2019
        %v2021 = vmul.f32 %v2018, %v2020
        %v2022 = vadd.f32 %v2018, %v2021
        %vm2023 = vweird.f32 %v1097
        %vm2024 = vweird.f32 %v2018
        %vm2025 = vmor %vm2023, %vm2024
        %v2026 = vsel %vm2025, %v2018, %v2022
        %v2027 = vand.u32 2147483647, %v1097
        %vm2028 = vcmp.eq.f32.partialorder %v2027, 8.507059e+37
        %v2029 = vand.u32 %v1097, 2147483648
        %v2030 = vor.u32 1.1754944e-38, %v2029
        %v2031 = vsel %vm2028, %v2030, %v2026
        %v2032 = vrcp.pop %v1098
        %v2033 = vmul.f32 %v1098, %v2032
        %v2034 = vsub.f32 1.0, %v2033
        %v2035 = vmul.f32 %v2032, %v2034
        %v2036 = vadd.f32 %v2032, %v2035
        %vm2037 = vweird.f32 %v1098
        %vm2038 = vweird.f32 %v2032
        %vm2039 = vmor %vm2037, %vm2038
        %v2040 = vsel %vm2039, %v2032, %v2036
        %v2041 = vand.u32 2147483647, %v1098
        %vm2042 = vcmp.eq.f32.partialorder %v2041, 8.507059e+37
        %v2043 = vand.u32 %v1098, 2147483648
        %v2044 = vor.u32 1.1754944e-38, %v2043
        %v2045 = vsel %vm2042, %v2044, %v2040
        %v2046 = vrcp.pop %v1099
        %v2047 = vmul.f32 %v1099, %v2046
        %v2048 = vsub.f32 1.0, %v2047
        %v2049 = vmul.f32 %v2046, %v2048
        %v2050 = vadd.f32 %v2046, %v2049
        %vm2051 = vweird.f32 %v1099
        %vm2052 = vweird.f32 %v2046
        %vm2053 = vmor %vm2051, %vm2052
        %v2054 = vsel %vm2053, %v2046, %v2050
        %v2055 = vand.u32 2147483647, %v1099
        %vm2056 = vcmp.eq.f32.partialorder %v2055, 8.507059e+37
        %v2057 = vand.u32 %v1099, 2147483648
        %v2058 = vor.u32 1.1754944e-38, %v2057
        %v2059 = vsel %vm2056, %v2058, %v2054
        %v2060 = vrcp.pop %v1100
        %v2061 = vmul.f32 %v1100, %v2060
        %v2062 = vsub.f32 1.0, %v2061
        %v2063 = vmul.f32 %v2060, %v2062
        %v2064 = vadd.f32 %v2060, %v2063
        %vm2065 = vweird.f32 %v1100
        %vm2066 = vweird.f32 %v2060
        %vm2067 = vmor %vm2065, %vm2066
        %v2068 = vsel %vm2067, %v2060, %v2064
        %v2069 = vand.u32 2147483647, %v1100
        %vm2070 = vcmp.eq.f32.partialorder %v2069, 8.507059e+37
        %v2071 = vand.u32 %v1100, 2147483648
        %v2072 = vor.u32 1.1754944e-38, %v2071
        %v2073 = vsel %vm2070, %v2072, %v2068
        %v2074 = vrcp.pop %v1101
        %v2075 = vmul.f32 %v1101, %v2074
        %v2076 = vsub.f32 1.0, %v2075
        %v2077 = vmul.f32 %v2074, %v2076
        %v2078 = vadd.f32 %v2074, %v2077
        %vm2079 = vweird.f32 %v1101
        %vm2080 = vweird.f32 %v2074
        %vm2081 = vmor %vm2079, %vm2080
        %v2082 = vsel %vm2081, %v2074, %v2078
        %v2083 = vand.u32 2147483647, %v1101
        %vm2084 = vcmp.eq.f32.partialorder %v2083, 8.507059e+37
        %v2085 = vand.u32 %v1101, 2147483648
        %v2086 = vor.u32 1.1754944e-38, %v2085
        %v2087 = vsel %vm2084, %v2086, %v2082
        %v2088 = vrcp.pop %v1102
        %v2089 = vmul.f32 %v1102, %v2088
        %v2090 = vsub.f32 1.0, %v2089
        %v2091 = vmul.f32 %v2088, %v2090
        %v2092 = vadd.f32 %v2088, %v2091
        %vm2093 = vweird.f32 %v1102
        %vm2094 = vweird.f32 %v2088
        %vm2095 = vmor %vm2093, %vm2094
        %v2096 = vsel %vm2095, %v2088, %v2092
        %v2097 = vand.u32 2147483647, %v1102
        %vm2098 = vcmp.eq.f32.partialorder %v2097, 8.507059e+37
        %v2099 = vand.u32 %v1102, 2147483648
        %v2100 = vor.u32 1.1754944e-38, %v2099
        %v2101 = vsel %vm2098, %v2100, %v2096
        %v2102 = vrcp.pop %v1103
        %v2103 = vmul.f32 %v1103, %v2102
        %v2104 = vsub.f32 1.0, %v2103
        %v2105 = vmul.f32 %v2102, %v2104
        %v2106 = vadd.f32 %v2102, %v2105
        %vm2107 = vweird.f32 %v1103
        %vm2108 = vweird.f32 %v2102
        %vm2109 = vmor %vm2107, %vm2108
        %v2110 = vsel %vm2109, %v2102, %v2106
        %v2111 = vand.u32 2147483647, %v1103
        %vm2112 = vcmp.eq.f32.partialorder %v2111, 8.507059e+37
        %v2113 = vand.u32 %v1103, 2147483648
        %v2114 = vor.u32 1.1754944e-38, %v2113
        %v2115 = vsel %vm2112, %v2114, %v2110
        %v2116 = vrcp.pop %v1104
        %v2117 = vmul.f32 %v1104, %v2116
        %v2118 = vsub.f32 1.0, %v2117
        %v2119 = vmul.f32 %v2116, %v2118
        %v2120 = vadd.f32 %v2116, %v2119
        %vm2121 = vweird.f32 %v1104
        %vm2122 = vweird.f32 %v2116
        %vm2123 = vmor %vm2121, %vm2122
        %v2124 = vsel %vm2123, %v2116, %v2120
        %v2125 = vand.u32 2147483647, %v1104
        %vm2126 = vcmp.eq.f32.partialorder %v2125, 8.507059e+37
        %v2127 = vand.u32 %v1104, 2147483648
        %v2128 = vor.u32 1.1754944e-38, %v2127
        %v2129 = vsel %vm2126, %v2128, %v2124
        %v2130 = vrcp.pop %v1105
        %v2131 = vmul.f32 %v1105, %v2130
        %v2132 = vsub.f32 1.0, %v2131
        %v2133 = vmul.f32 %v2130, %v2132
        %v2134 = vadd.f32 %v2130, %v2133
        %vm2135 = vweird.f32 %v1105
        %vm2136 = vweird.f32 %v2130
        %vm2137 = vmor %vm2135, %vm2136
        %v2138 = vsel %vm2137, %v2130, %v2134
        %v2139 = vand.u32 2147483647, %v1105
        %vm2140 = vcmp.eq.f32.partialorder %v2139, 8.507059e+37
        %v2141 = vand.u32 %v1105, 2147483648
        %v2142 = vor.u32 1.1754944e-38, %v2141
        %v2143 = vsel %vm2140, %v2142, %v2138
        %v2144 = vrcp.pop %v1106
        %v2145 = vmul.f32 %v1106, %v2144
        %v2146 = vsub.f32 1.0, %v2145
        %v2147 = vmul.f32 %v2144, %v2146
        %v2148 = vadd.f32 %v2144, %v2147
        %vm2149 = vweird.f32 %v1106
        %vm2150 = vweird.f32 %v2144
        %vm2151 = vmor %vm2149, %vm2150
        %v2152 = vsel %vm2151, %v2144, %v2148
        %v2153 = vand.u32 2147483647, %v1106
        %vm2154 = vcmp.eq.f32.partialorder %v2153, 8.507059e+37
        %v2155 = vand.u32 %v1106, 2147483648
        %v2156 = vor.u32 1.1754944e-38, %v2155
        %v2157 = vsel %vm2154, %v2156, %v2152
        %v2158 = vrcp.pop %v1107
        %v2159 = vmul.f32 %v1107, %v2158
        %v2160 = vsub.f32 1.0, %v2159
        %v2161 = vmul.f32 %v2158, %v2160
        %v2162 = vadd.f32 %v2158, %v2161
        %vm2163 = vweird.f32 %v1107
        %vm2164 = vweird.f32 %v2158
        %vm2165 = vmor %vm2163, %vm2164
        %v2166 = vsel %vm2165, %v2158, %v2162
        %v2167 = vand.u32 2147483647, %v1107
        %vm2168 = vcmp.eq.f32.partialorder %v2167, 8.507059e+37
        %v2169 = vand.u32 %v1107, 2147483648
        %v2170 = vor.u32 1.1754944e-38, %v2169
        %v2171 = vsel %vm2168, %v2170, %v2166
        %v2172 = vrcp.pop %v1108
        %v2173 = vmul.f32 %v1108, %v2172
        %v2174 = vsub.f32 1.0, %v2173
        %v2175 = vmul.f32 %v2172, %v2174
        %v2176 = vadd.f32 %v2172, %v2175
        %vm2177 = vweird.f32 %v1108
        %vm2178 = vweird.f32 %v2172
        %vm2179 = vmor %vm2177, %vm2178
        %v2180 = vsel %vm2179, %v2172, %v2176
        %v2181 = vand.u32 2147483647, %v1108
        %vm2182 = vcmp.eq.f32.partialorder %v2181, 8.507059e+37
        %v2183 = vand.u32 %v1108, 2147483648
        %v2184 = vor.u32 1.1754944e-38, %v2183
        %v2185 = vsel %vm2182, %v2184, %v2180
        %v2186 = vrcp.pop %v1109
        %v2187 = vmul.f32 %v1109, %v2186
        %v2188 = vsub.f32 1.0, %v2187
        %v2189 = vmul.f32 %v2186, %v2188
        %v2190 = vadd.f32 %v2186, %v2189
        %vm2191 = vweird.f32 %v1109
        %vm2192 = vweird.f32 %v2186
        %vm2193 = vmor %vm2191, %vm2192
        %v2194 = vsel %vm2193, %v2186, %v2190
        %v2195 = vand.u32 2147483647, %v1109
        %vm2196 = vcmp.eq.f32.partialorder %v2195, 8.507059e+37
        %v2197 = vand.u32 %v1109, 2147483648
        %v2198 = vor.u32 1.1754944e-38, %v2197
        %v2199 = vsel %vm2196, %v2198, %v2194
        %v2200 = vrcp.pop %v1110
        %v2201 = vmul.f32 %v1110, %v2200
        %v2202 = vsub.f32 1.0, %v2201
        %v2203 = vmul.f32 %v2200, %v2202
        %v2204 = vadd.f32 %v2200, %v2203
        %vm2205 = vweird.f32 %v1110
        %vm2206 = vweird.f32 %v2200
        %vm2207 = vmor %vm2205, %vm2206
        %v2208 = vsel %vm2207, %v2200, %v2204
        %v2209 = vand.u32 2147483647, %v1110
        %vm2210 = vcmp.eq.f32.partialorder %v2209, 8.507059e+37
        %v2211 = vand.u32 %v1110, 2147483648
        %v2212 = vor.u32 1.1754944e-38, %v2211
        %v2213 = vsel %vm2210, %v2212, %v2208
        %v2214 = vrcp.pop %v1111
        %v2215 = vmul.f32 %v1111, %v2214
        %v2216 = vsub.f32 1.0, %v2215
        %v2217 = vmul.f32 %v2214, %v2216
        %v2218 = vadd.f32 %v2214, %v2217
        %vm2219 = vweird.f32 %v1111
        %vm2220 = vweird.f32 %v2214
        %vm2221 = vmor %vm2219, %vm2220
        %v2222 = vsel %vm2221, %v2214, %v2218
        %v2223 = vand.u32 2147483647, %v1111
        %vm2224 = vcmp.eq.f32.partialorder %v2223, 8.507059e+37
        %v2225 = vand.u32 %v1111, 2147483648
        %v2226 = vor.u32 1.1754944e-38, %v2225
        %v2227 = vsel %vm2224, %v2226, %v2222
        %v2228 = vrcp.pop %v1112
        %v2229 = vmul.f32 %v1112, %v2228
        %v2230 = vsub.f32 1.0, %v2229
        %v2231 = vmul.f32 %v2228, %v2230
        %v2232 = vadd.f32 %v2228, %v2231
        %vm2233 = vweird.f32 %v1112
        %vm2234 = vweird.f32 %v2228
        %vm2235 = vmor %vm2233, %vm2234
        %v2236 = vsel %vm2235, %v2228, %v2232
        %v2237 = vand.u32 2147483647, %v1112
        %vm2238 = vcmp.eq.f32.partialorder %v2237, 8.507059e+37
        %v2239 = vand.u32 %v1112, 2147483648
        %v2240 = vor.u32 1.1754944e-38, %v2239
        %v2241 = vsel %vm2238, %v2240, %v2236
        %v2242 = vrcp.pop %v1113
        %v2243 = vmul.f32 %v1113, %v2242
        %v2244 = vsub.f32 1.0, %v2243
        %v2245 = vmul.f32 %v2242, %v2244
        %v2246 = vadd.f32 %v2242, %v2245
        %vm2247 = vweird.f32 %v1113
        %vm2248 = vweird.f32 %v2242
        %vm2249 = vmor %vm2247, %vm2248
        %v2250 = vsel %vm2249, %v2242, %v2246
        %v2251 = vand.u32 2147483647, %v1113
        %vm2252 = vcmp.eq.f32.partialorder %v2251, 8.507059e+37
        %v2253 = vand.u32 %v1113, 2147483648
        %v2254 = vor.u32 1.1754944e-38, %v2253
        %v2255 = vsel %vm2252, %v2254, %v2250
        %v2256 = vrcp.pop %v1114
        %v2257 = vmul.f32 %v1114, %v2256
        %v2258 = vsub.f32 1.0, %v2257
        %v2259 = vmul.f32 %v2256, %v2258
        %v2260 = vadd.f32 %v2256, %v2259
        %vm2261 = vweird.f32 %v1114
        %vm2262 = vweird.f32 %v2256
        %vm2263 = vmor %vm2261, %vm2262
        %v2264 = vsel %vm2263, %v2256, %v2260
        %v2265 = vand.u32 2147483647, %v1114
        %vm2266 = vcmp.eq.f32.partialorder %v2265, 8.507059e+37
        %v2267 = vand.u32 %v1114, 2147483648
        %v2268 = vor.u32 1.1754944e-38, %v2267
        %v2269 = vsel %vm2266, %v2268, %v2264
        %v2270 = vrcp.pop %v1115
        %v2271 = vmul.f32 %v1115, %v2270
        %v2272 = vsub.f32 1.0, %v2271
        %v2273 = vmul.f32 %v2270, %v2272
        %v2274 = vadd.f32 %v2270, %v2273
        %vm2275 = vweird.f32 %v1115
        %vm2276 = vweird.f32 %v2270
        %vm2277 = vmor %vm2275, %vm2276
        %v2278 = vsel %vm2277, %v2270, %v2274
        %v2279 = vand.u32 2147483647, %v1115
        %vm2280 = vcmp.eq.f32.partialorder %v2279, 8.507059e+37
        %v2281 = vand.u32 %v1115, 2147483648
        %v2282 = vor.u32 1.1754944e-38, %v2281
        %v2283 = vsel %vm2280, %v2282, %v2278
        %v2284 = vrcp.pop %v1116
        %v2285 = vmul.f32 %v1116, %v2284
        %v2286 = vsub.f32 1.0, %v2285
        %v2287 = vmul.f32 %v2284, %v2286
        %v2288 = vadd.f32 %v2284, %v2287
        %vm2289 = vweird.f32 %v1116
        %vm2290 = vweird.f32 %v2284
        %vm2291 = vmor %vm2289, %vm2290
        %v2292 = vsel %vm2291, %v2284, %v2288
        %v2293 = vand.u32 2147483647, %v1116
        %vm2294 = vcmp.eq.f32.partialorder %v2293, 8.507059e+37
        %v2295 = vand.u32 %v1116, 2147483648
        %v2296 = vor.u32 1.1754944e-38, %v2295
        %v2297 = vsel %vm2294, %v2296, %v2292
        %v2298 = vrcp.pop %v1117
        %v2299 = vmul.f32 %v1117, %v2298
        %v2300 = vsub.f32 1.0, %v2299
        %v2301 = vmul.f32 %v2298, %v2300
        %v2302 = vadd.f32 %v2298, %v2301
        %vm2303 = vweird.f32 %v1117
        %vm2304 = vweird.f32 %v2298
        %vm2305 = vmor %vm2303, %vm2304
        %v2306 = vsel %vm2305, %v2298, %v2302
        %v2307 = vand.u32 2147483647, %v1117
        %vm2308 = vcmp.eq.f32.partialorder %v2307, 8.507059e+37
        %v2309 = vand.u32 %v1117, 2147483648
        %v2310 = vor.u32 1.1754944e-38, %v2309
        %v2311 = vsel %vm2308, %v2310, %v2306
        %v2312 = vrcp.pop %v1118
        %v2313 = vmul.f32 %v1118, %v2312
        %v2314 = vsub.f32 1.0, %v2313
        %v2315 = vmul.f32 %v2312, %v2314
        %v2316 = vadd.f32 %v2312, %v2315
        %vm2317 = vweird.f32 %v1118
        %vm2318 = vweird.f32 %v2312
        %vm2319 = vmor %vm2317, %vm2318
        %v2320 = vsel %vm2319, %v2312, %v2316
        %v2321 = vand.u32 2147483647, %v1118
        %vm2322 = vcmp.eq.f32.partialorder %v2321, 8.507059e+37
        %v2323 = vand.u32 %v1118, 2147483648
        %v2324 = vor.u32 1.1754944e-38, %v2323
        %v2325 = vsel %vm2322, %v2324, %v2320
        %v2326 = vrcp.pop %v1119
        %v2327 = vmul.f32 %v1119, %v2326
        %v2328 = vsub.f32 1.0, %v2327
        %v2329 = vmul.f32 %v2326, %v2328
        %v2330 = vadd.f32 %v2326, %v2329
        %vm2331 = vweird.f32 %v1119
        %vm2332 = vweird.f32 %v2326
        %vm2333 = vmor %vm2331, %vm2332
        %v2334 = vsel %vm2333, %v2326, %v2330
        %v2335 = vand.u32 2147483647, %v1119
        %vm2336 = vcmp.eq.f32.partialorder %v2335, 8.507059e+37
        %v2337 = vand.u32 %v1119, 2147483648
        %v2338 = vor.u32 1.1754944e-38, %v2337
        %v2339 = vsel %vm2336, %v2338, %v2334
        %v2340 = vrcp.pop %v1120
        %v2341 = vmul.f32 %v1120, %v2340
        %v2342 = vsub.f32 1.0, %v2341
        %v2343 = vmul.f32 %v2340, %v2342
        %v2344 = vadd.f32 %v2340, %v2343
        %vm2345 = vweird.f32 %v1120
        %vm2346 = vweird.f32 %v2340
        %vm2347 = vmor %vm2345, %vm2346
        %v2348 = vsel %vm2347, %v2340, %v2344
        %v2349 = vand.u32 2147483647, %v1120
        %vm2350 = vcmp.eq.f32.partialorder %v2349, 8.507059e+37
        %v2351 = vand.u32 %v1120, 2147483648
        %v2352 = vor.u32 1.1754944e-38, %v2351
        %v2353 = vsel %vm2350, %v2352, %v2348
        %v2354 = vrcp.pop %v1121
        %v2355 = vmul.f32 %v1121, %v2354
        %v2356 = vsub.f32 1.0, %v2355
        %v2357 = vmul.f32 %v2354, %v2356
        %v2358 = vadd.f32 %v2354, %v2357
        %vm2359 = vweird.f32 %v1121
        %vm2360 = vweird.f32 %v2354
        %vm2361 = vmor %vm2359, %vm2360
        %v2362 = vsel %vm2361, %v2354, %v2358
        %v2363 = vand.u32 2147483647, %v1121
        %vm2364 = vcmp.eq.f32.partialorder %v2363, 8.507059e+37
        %v2365 = vand.u32 %v1121, 2147483648
        %v2366 = vor.u32 1.1754944e-38, %v2365
        %v2367 = vsel %vm2364, %v2366, %v2362
        %v2368 = vrcp.pop %v1122
        %v2369 = vmul.f32 %v1122, %v2368
        %v2370 = vsub.f32 1.0, %v2369
        %v2371 = vmul.f32 %v2368, %v2370
        %v2372 = vadd.f32 %v2368, %v2371
        %vm2373 = vweird.f32 %v1122
        %vm2374 = vweird.f32 %v2368
        %vm2375 = vmor %vm2373, %vm2374
        %v2376 = vsel %vm2375, %v2368, %v2372
        %v2377 = vand.u32 2147483647, %v1122
        %vm2378 = vcmp.eq.f32.partialorder %v2377, 8.507059e+37
        %v2379 = vand.u32 %v1122, 2147483648
        %v2380 = vor.u32 1.1754944e-38, %v2379
        %v2381 = vsel %vm2378, %v2380, %v2376
        %v2382 = vrcp.pop %v1123
        %v2383 = vmul.f32 %v1123, %v2382
        %v2384 = vsub.f32 1.0, %v2383
        %v2385 = vmul.f32 %v2382, %v2384
        %v2386 = vadd.f32 %v2382, %v2385
        %vm2387 = vweird.f32 %v1123
        %vm2388 = vweird.f32 %v2382
        %vm2389 = vmor %vm2387, %vm2388
        %v2390 = vsel %vm2389, %v2382, %v2386
        %v2391 = vand.u32 2147483647, %v1123
        %vm2392 = vcmp.eq.f32.partialorder %v2391, 8.507059e+37
        %v2393 = vand.u32 %v1123, 2147483648
        %v2394 = vor.u32 1.1754944e-38, %v2393
        %v2395 = vsel %vm2392, %v2394, %v2390
        %v2396 = vrcp.pop %v1124
        %v2397 = vmul.f32 %v1124, %v2396
        %v2398 = vsub.f32 1.0, %v2397
        %v2399 = vmul.f32 %v2396, %v2398
        %v2400 = vadd.f32 %v2396, %v2399
        %vm2401 = vweird.f32 %v1124
        %vm2402 = vweird.f32 %v2396
        %vm2403 = vmor %vm2401, %vm2402
        %v2404 = vsel %vm2403, %v2396, %v2400
        %v2405 = vand.u32 2147483647, %v1124
        %vm2406 = vcmp.eq.f32.partialorder %v2405, 8.507059e+37
        %v2407 = vand.u32 %v1124, 2147483648
        %v2408 = vor.u32 1.1754944e-38, %v2407
        %v2409 = vsel %vm2406, %v2408, %v2404
        %v2410 = vrcp.pop %v1125
        %v2411 = vmul.f32 %v1125, %v2410
        %v2412 = vsub.f32 1.0, %v2411
        %v2413 = vmul.f32 %v2410, %v2412
        %v2414 = vadd.f32 %v2410, %v2413
        %vm2415 = vweird.f32 %v1125
        %vm2416 = vweird.f32 %v2410
        %vm2417 = vmor %vm2415, %vm2416
        %v2418 = vsel %vm2417, %v2410, %v2414
        %v2419 = vand.u32 2147483647, %v1125
        %vm2420 = vcmp.eq.f32.partialorder %v2419, 8.507059e+37
        %v2421 = vand.u32 %v1125, 2147483648
        %v2422 = vor.u32 1.1754944e-38, %v2421
        %v2423 = vsel %vm2420, %v2422, %v2418
        %v2424 = vrcp.pop %v1126
        %v2425 = vmul.f32 %v1126, %v2424
        %v2426 = vsub.f32 1.0, %v2425
        %v2427 = vmul.f32 %v2424, %v2426
        %v2428 = vadd.f32 %v2424, %v2427
        %vm2429 = vweird.f32 %v1126
        %vm2430 = vweird.f32 %v2424
        %vm2431 = vmor %vm2429, %vm2430
        %v2432 = vsel %vm2431, %v2424, %v2428
        %v2433 = vand.u32 2147483647, %v1126
        %vm2434 = vcmp.eq.f32.partialorder %v2433, 8.507059e+37
        %v2435 = vand.u32 %v1126, 2147483648
        %v2436 = vor.u32 1.1754944e-38, %v2435
        %v2437 = vsel %vm2434, %v2436, %v2432
        %v2438 = vrcp.pop %v1127
        %v2439 = vmul.f32 %v1127, %v2438
        %v2440 = vsub.f32 1.0, %v2439
        %v2441 = vmul.f32 %v2438, %v2440
        %v2442 = vadd.f32 %v2438, %v2441
        %vm2443 = vweird.f32 %v1127
        %vm2444 = vweird.f32 %v2438
        %vm2445 = vmor %vm2443, %vm2444
        %v2446 = vsel %vm2445, %v2438, %v2442
        %v2447 = vand.u32 2147483647, %v1127
        %vm2448 = vcmp.eq.f32.partialorder %v2447, 8.507059e+37
        %v2449 = vand.u32 %v1127, 2147483648
        %v2450 = vor.u32 1.1754944e-38, %v2449
        %v2451 = vsel %vm2448, %v2450, %v2446
        %v2452 = vrcp.pop %v1128
        %v2453 = vmul.f32 %v1128, %v2452
        %v2454 = vsub.f32 1.0, %v2453
        %v2455 = vmul.f32 %v2452, %v2454
        %v2456 = vadd.f32 %v2452, %v2455
        %vm2457 = vweird.f32 %v1128
        %vm2458 = vweird.f32 %v2452
        %vm2459 = vmor %vm2457, %vm2458
        %v2460 = vsel %vm2459, %v2452, %v2456
        %v2461 = vand.u32 2147483647, %v1128
        %vm2462 = vcmp.eq.f32.partialorder %v2461, 8.507059e+37
        %v2463 = vand.u32 %v1128, 2147483648
        %v2464 = vor.u32 1.1754944e-38, %v2463
        %v2465 = vsel %vm2462, %v2464, %v2460
        %v2466 = vrcp.pop %v1129
        %v2467 = vmul.f32 %v1129, %v2466
        %v2468 = vsub.f32 1.0, %v2467
        %v2469 = vmul.f32 %v2466, %v2468
        %v2470 = vadd.f32 %v2466, %v2469
        %vm2471 = vweird.f32 %v1129
        %vm2472 = vweird.f32 %v2466
        %vm2473 = vmor %vm2471, %vm2472
        %v2474 = vsel %vm2473, %v2466, %v2470
        %v2475 = vand.u32 2147483647, %v1129
        %vm2476 = vcmp.eq.f32.partialorder %v2475, 8.507059e+37
        %v2477 = vand.u32 %v1129, 2147483648
        %v2478 = vor.u32 1.1754944e-38, %v2477
        %v2479 = vsel %vm2476, %v2478, %v2474
        %v2480 = vrcp.pop %v1130
        %v2481 = vmul.f32 %v1130, %v2480
        %v2482 = vsub.f32 1.0, %v2481
        %v2483 = vmul.f32 %v2480, %v2482
        %v2484 = vadd.f32 %v2480, %v2483
        %vm2485 = vweird.f32 %v1130
        %vm2486 = vweird.f32 %v2480
        %vm2487 = vmor %vm2485, %vm2486
        %v2488 = vsel %vm2487, %v2480, %v2484
        %v2489 = vand.u32 2147483647, %v1130
        %vm2490 = vcmp.eq.f32.partialorder %v2489, 8.507059e+37
        %v2491 = vand.u32 %v1130, 2147483648
        %v2492 = vor.u32 1.1754944e-38, %v2491
        %v2493 = vsel %vm2490, %v2492, %v2488
        %v2494 = vrcp.pop %v1131
        %v2495 = vmul.f32 %v1131, %v2494
        %v2496 = vsub.f32 1.0, %v2495
        %v2497 = vmul.f32 %v2494, %v2496
        %v2498 = vadd.f32 %v2494, %v2497
        %vm2499 = vweird.f32 %v1131
        %vm2500 = vweird.f32 %v2494
        %vm2501 = vmor %vm2499, %vm2500
        %v2502 = vsel %vm2501, %v2494, %v2498
        %v2503 = vand.u32 2147483647, %v1131
        %vm2504 = vcmp.eq.f32.partialorder %v2503, 8.507059e+37
        %v2505 = vand.u32 %v1131, 2147483648
        %v2506 = vor.u32 1.1754944e-38, %v2505
        %v2507 = vsel %vm2504, %v2506, %v2502
        %v2508 = vrcp.pop %v1132
        %v2509 = vmul.f32 %v1132, %v2508
        %v2510 = vsub.f32 1.0, %v2509
        %v2511 = vmul.f32 %v2508, %v2510
        %v2512 = vadd.f32 %v2508, %v2511
        %vm2513 = vweird.f32 %v1132
        %vm2514 = vweird.f32 %v2508
        %vm2515 = vmor %vm2513, %vm2514
        %v2516 = vsel %vm2515, %v2508, %v2512
        %v2517 = vand.u32 2147483647, %v1132
        %vm2518 = vcmp.eq.f32.partialorder %v2517, 8.507059e+37
        %v2519 = vand.u32 %v1132, 2147483648
        %v2520 = vor.u32 1.1754944e-38, %v2519
        %v2521 = vsel %vm2518, %v2520, %v2516
        %v2522 = vrcp.pop %v1133
        %v2523 = vmul.f32 %v1133, %v2522
        %v2524 = vsub.f32 1.0, %v2523
        %v2525 = vmul.f32 %v2522, %v2524
        %v2526 = vadd.f32 %v2522, %v2525
        %vm2527 = vweird.f32 %v1133
        %vm2528 = vweird.f32 %v2522
        %vm2529 = vmor %vm2527, %vm2528
        %v2530 = vsel %vm2529, %v2522, %v2526
        %v2531 = vand.u32 2147483647, %v1133
        %vm2532 = vcmp.eq.f32.partialorder %v2531, 8.507059e+37
        %v2533 = vand.u32 %v1133, 2147483648
        %v2534 = vor.u32 1.1754944e-38, %v2533
        %v2535 = vsel %vm2532, %v2534, %v2530
        %v2536 = vrcp.pop %v1134
        %v2537 = vmul.f32 %v1134, %v2536
        %v2538 = vsub.f32 1.0, %v2537
        %v2539 = vmul.f32 %v2536, %v2538
        %v2540 = vadd.f32 %v2536, %v2539
        %vm2541 = vweird.f32 %v1134
        %vm2542 = vweird.f32 %v2536
        %vm2543 = vmor %vm2541, %vm2542
        %v2544 = vsel %vm2543, %v2536, %v2540
        %v2545 = vand.u32 2147483647, %v1134
        %vm2546 = vcmp.eq.f32.partialorder %v2545, 8.507059e+37
        %v2547 = vand.u32 %v1134, 2147483648
        %v2548 = vor.u32 1.1754944e-38, %v2547
        %v2549 = vsel %vm2546, %v2548, %v2544
        %v2550 = vrcp.pop %v1135
        %v2551 = vmul.f32 %v1135, %v2550
        %v2552 = vsub.f32 1.0, %v2551
        %v2553 = vmul.f32 %v2550, %v2552
        %v2554 = vadd.f32 %v2550, %v2553
        %vm2555 = vweird.f32 %v1135
        %vm2556 = vweird.f32 %v2550
        %vm2557 = vmor %vm2555, %vm2556
        %v2558 = vsel %vm2557, %v2550, %v2554
        %v2559 = vand.u32 2147483647, %v1135
        %vm2560 = vcmp.eq.f32.partialorder %v2559, 8.507059e+37
        %v2561 = vand.u32 %v1135, 2147483648
        %v2562 = vor.u32 1.1754944e-38, %v2561
        %v2563 = vsel %vm2560, %v2562, %v2558
        %v2564 = vrcp.pop %v1136
        %v2565 = vmul.f32 %v1136, %v2564
        %v2566 = vsub.f32 1.0, %v2565
        %v2567 = vmul.f32 %v2564, %v2566
        %v2568 = vadd.f32 %v2564, %v2567
        %vm2569 = vweird.f32 %v1136
        %vm2570 = vweird.f32 %v2564
        %vm2571 = vmor %vm2569, %vm2570
        %v2572 = vsel %vm2571, %v2564, %v2568
        %v2573 = vand.u32 2147483647, %v1136
        %vm2574 = vcmp.eq.f32.partialorder %v2573, 8.507059e+37
        %v2575 = vand.u32 %v1136, 2147483648
        %v2576 = vor.u32 1.1754944e-38, %v2575
        %v2577 = vsel %vm2574, %v2576, %v2572
        %v2578 = vrcp.pop %v1137
        %v2579 = vmul.f32 %v1137, %v2578
        %v2580 = vsub.f32 1.0, %v2579
        %v2581 = vmul.f32 %v2578, %v2580
        %v2582 = vadd.f32 %v2578, %v2581
        %vm2583 = vweird.f32 %v1137
        %vm2584 = vweird.f32 %v2578
        %vm2585 = vmor %vm2583, %vm2584
        %v2586 = vsel %vm2585, %v2578, %v2582
        %v2587 = vand.u32 2147483647, %v1137
        %vm2588 = vcmp.eq.f32.partialorder %v2587, 8.507059e+37
        %v2589 = vand.u32 %v1137, 2147483648
        %v2590 = vor.u32 1.1754944e-38, %v2589
        %v2591 = vsel %vm2588, %v2590, %v2586
        %v2592 = vrcp.pop %v1138
        %v2593 = vmul.f32 %v1138, %v2592
        %v2594 = vsub.f32 1.0, %v2593
        %v2595 = vmul.f32 %v2592, %v2594
        %v2596 = vadd.f32 %v2592, %v2595
        %vm2597 = vweird.f32 %v1138
        %vm2598 = vweird.f32 %v2592
        %vm2599 = vmor %vm2597, %vm2598
        %v2600 = vsel %vm2599, %v2592, %v2596
        %v2601 = vand.u32 2147483647, %v1138
        %vm2602 = vcmp.eq.f32.partialorder %v2601, 8.507059e+37
        %v2603 = vand.u32 %v1138, 2147483648
        %v2604 = vor.u32 1.1754944e-38, %v2603
        %v2605 = vsel %vm2602, %v2604, %v2600
        %v2606 = vrcp.pop %v1139
        %v2607 = vmul.f32 %v1139, %v2606
        %v2608 = vsub.f32 1.0, %v2607
        %v2609 = vmul.f32 %v2606, %v2608
        %v2610 = vadd.f32 %v2606, %v2609
        %vm2611 = vweird.f32 %v1139
        %vm2612 = vweird.f32 %v2606
        %vm2613 = vmor %vm2611, %vm2612
        %v2614 = vsel %vm2613, %v2606, %v2610
        %v2615 = vand.u32 2147483647, %v1139
        %vm2616 = vcmp.eq.f32.partialorder %v2615, 8.507059e+37
        %v2617 = vand.u32 %v1139, 2147483648
        %v2618 = vor.u32 1.1754944e-38, %v2617
        %v2619 = vsel %vm2616, %v2618, %v2614
        %v2620 = vrcp.pop %v1140
        %v2621 = vmul.f32 %v1140, %v2620
        %v2622 = vsub.f32 1.0, %v2621
        %v2623 = vmul.f32 %v2620, %v2622
        %v2624 = vadd.f32 %v2620, %v2623
        %vm2625 = vweird.f32 %v1140
        %vm2626 = vweird.f32 %v2620
        %vm2627 = vmor %vm2625, %vm2626
        %v2628 = vsel %vm2627, %v2620, %v2624
        %v2629 = vand.u32 2147483647, %v1140
        %vm2630 = vcmp.eq.f32.partialorder %v2629, 8.507059e+37
        %v2631 = vand.u32 %v1140, 2147483648
        %v2632 = vor.u32 1.1754944e-38, %v2631
        %v2633 = vsel %vm2630, %v2632, %v2628
        %v2634 = vrcp.pop %v1141
        %v2635 = vmul.f32 %v1141, %v2634
        %v2636 = vsub.f32 1.0, %v2635
        %v2637 = vmul.f32 %v2634, %v2636
        %v2638 = vadd.f32 %v2634, %v2637
        %vm2639 = vweird.f32 %v1141
        %vm2640 = vweird.f32 %v2634
        %vm2641 = vmor %vm2639, %vm2640
        %v2642 = vsel %vm2641, %v2634, %v2638
        %v2643 = vand.u32 2147483647, %v1141
        %vm2644 = vcmp.eq.f32.partialorder %v2643, 8.507059e+37
        %v2645 = vand.u32 %v1141, 2147483648
        %v2646 = vor.u32 1.1754944e-38, %v2645
        %v2647 = vsel %vm2644, %v2646, %v2642
        %v2648 = vrcp.pop %v1142
        %v2649 = vmul.f32 %v1142, %v2648
        %v2650 = vsub.f32 1.0, %v2649
        %v2651 = vmul.f32 %v2648, %v2650
        %v2652 = vadd.f32 %v2648, %v2651
        %vm2653 = vweird.f32 %v1142
        %vm2654 = vweird.f32 %v2648
        %vm2655 = vmor %vm2653, %vm2654
        %v2656 = vsel %vm2655, %v2648, %v2652
        %v2657 = vand.u32 2147483647, %v1142
        %vm2658 = vcmp.eq.f32.partialorder %v2657, 8.507059e+37
        %v2659 = vand.u32 %v1142, 2147483648
        %v2660 = vor.u32 1.1754944e-38, %v2659
        %v2661 = vsel %vm2658, %v2660, %v2656
        %v2662 = vrcp.pop %v1143
        %v2663 = vmul.f32 %v1143, %v2662
        %v2664 = vsub.f32 1.0, %v2663
        %v2665 = vmul.f32 %v2662, %v2664
        %v2666 = vadd.f32 %v2662, %v2665
        %vm2667 = vweird.f32 %v1143
        %vm2668 = vweird.f32 %v2662
        %vm2669 = vmor %vm2667, %vm2668
        %v2670 = vsel %vm2669, %v2662, %v2666
        %v2671 = vand.u32 2147483647, %v1143
        %vm2672 = vcmp.eq.f32.partialorder %v2671, 8.507059e+37
        %v2673 = vand.u32 %v1143, 2147483648
        %v2674 = vor.u32 1.1754944e-38, %v2673
        %v2675 = vsel %vm2672, %v2674, %v2670
        %v2676 = vrcp.pop %v1144
        %v2677 = vmul.f32 %v1144, %v2676
        %v2678 = vsub.f32 1.0, %v2677
        %v2679 = vmul.f32 %v2676, %v2678
        %v2680 = vadd.f32 %v2676, %v2679
        %vm2681 = vweird.f32 %v1144
        %vm2682 = vweird.f32 %v2676
        %vm2683 = vmor %vm2681, %vm2682
        %v2684 = vsel %vm2683, %v2676, %v2680
        %v2685 = vand.u32 2147483647, %v1144
        %vm2686 = vcmp.eq.f32.partialorder %v2685, 8.507059e+37
        %v2687 = vand.u32 %v1144, 2147483648
        %v2688 = vor.u32 1.1754944e-38, %v2687
        %v2689 = vsel %vm2686, %v2688, %v2684
        %v2690 = vrcp.pop %v1145
        %v2691 = vmul.f32 %v1145, %v2690
        %v2692 = vsub.f32 1.0, %v2691
        %v2693 = vmul.f32 %v2690, %v2692
        %v2694 = vadd.f32 %v2690, %v2693
        %vm2695 = vweird.f32 %v1145
        %vm2696 = vweird.f32 %v2690
        %vm2697 = vmor %vm2695, %vm2696
        %v2698 = vsel %vm2697, %v2690, %v2694
        %v2699 = vand.u32 2147483647, %v1145
        %vm2700 = vcmp.eq.f32.partialorder %v2699, 8.507059e+37
        %v2701 = vand.u32 %v1145, 2147483648
        %v2702 = vor.u32 1.1754944e-38, %v2701
        %v2703 = vsel %vm2700, %v2702, %v2698
        %v2704 = vrcp.pop %v1146
        %v2705 = vmul.f32 %v1146, %v2704
        %v2706 = vsub.f32 1.0, %v2705
        %v2707 = vmul.f32 %v2704, %v2706
        %v2708 = vadd.f32 %v2704, %v2707
        %vm2709 = vweird.f32 %v1146
        %vm2710 = vweird.f32 %v2704
        %vm2711 = vmor %vm2709, %vm2710
        %v2712 = vsel %vm2711, %v2704, %v2708
        %v2713 = vand.u32 2147483647, %v1146
        %vm2714 = vcmp.eq.f32.partialorder %v2713, 8.507059e+37
        %v2715 = vand.u32 %v1146, 2147483648
        %v2716 = vor.u32 1.1754944e-38, %v2715
        %v2717 = vsel %vm2714, %v2716, %v2712
        %v2718 = vrcp.pop %v1147
        %v2719 = vmul.f32 %v1147, %v2718
        %v2720 = vsub.f32 1.0, %v2719
        %v2721 = vmul.f32 %v2718, %v2720
        %v2722 = vadd.f32 %v2718, %v2721
        %vm2723 = vweird.f32 %v1147
        %vm2724 = vweird.f32 %v2718
        %vm2725 = vmor %vm2723, %vm2724
        %v2726 = vsel %vm2725, %v2718, %v2722
        %v2727 = vand.u32 2147483647, %v1147
        %vm2728 = vcmp.eq.f32.partialorder %v2727, 8.507059e+37
        %v2729 = vand.u32 %v1147, 2147483648
        %v2730 = vor.u32 1.1754944e-38, %v2729
        %v2731 = vsel %vm2728, %v2730, %v2726
        %v2732 = vrcp.pop %v1148
        %v2733 = vmul.f32 %v1148, %v2732
        %v2734 = vsub.f32 1.0, %v2733
        %v2735 = vmul.f32 %v2732, %v2734
        %v2736 = vadd.f32 %v2732, %v2735
        %vm2737 = vweird.f32 %v1148
        %vm2738 = vweird.f32 %v2732
        %vm2739 = vmor %vm2737, %vm2738
        %v2740 = vsel %vm2739, %v2732, %v2736
        %v2741 = vand.u32 2147483647, %v1148
        %vm2742 = vcmp.eq.f32.partialorder %v2741, 8.507059e+37
        %v2743 = vand.u32 %v1148, 2147483648
        %v2744 = vor.u32 1.1754944e-38, %v2743
        %v2745 = vsel %vm2742, %v2744, %v2740
        %v2746 = vrcp.pop %v1149
        %v2747 = vmul.f32 %v1149, %v2746
        %v2748 = vsub.f32 1.0, %v2747
        %v2749 = vmul.f32 %v2746, %v2748
        %v2750 = vadd.f32 %v2746, %v2749
        %vm2751 = vweird.f32 %v1149
        %vm2752 = vweird.f32 %v2746
        %vm2753 = vmor %vm2751, %vm2752
        %v2754 = vsel %vm2753, %v2746, %v2750
        %v2755 = vand.u32 2147483647, %v1149
        %vm2756 = vcmp.eq.f32.partialorder %v2755, 8.507059e+37
        %v2757 = vand.u32 %v1149, 2147483648
        %v2758 = vor.u32 1.1754944e-38, %v2757
        %v2759 = vsel %vm2756, %v2758, %v2754
        %v2760 = vrcp.pop %v1150
        %v2761 = vmul.f32 %v1150, %v2760
        %v2762 = vsub.f32 1.0, %v2761
        %v2763 = vmul.f32 %v2760, %v2762
        %v2764 = vadd.f32 %v2760, %v2763
        %vm2765 = vweird.f32 %v1150
        %vm2766 = vweird.f32 %v2760
        %vm2767 = vmor %vm2765, %vm2766
        %v2768 = vsel %vm2767, %v2760, %v2764
        %v2769 = vand.u32 2147483647, %v1150
        %vm2770 = vcmp.eq.f32.partialorder %v2769, 8.507059e+37
        %v2771 = vand.u32 %v1150, 2147483648
        %v2772 = vor.u32 1.1754944e-38, %v2771
        %v2773 = vsel %vm2770, %v2772, %v2768
        %v2774 = vrcp.pop %v1151
        %v2775 = vmul.f32 %v1151, %v2774
        %v2776 = vsub.f32 1.0, %v2775
        %v2777 = vmul.f32 %v2774, %v2776
        %v2778 = vadd.f32 %v2774, %v2777
        %vm2779 = vweird.f32 %v1151
        %vm2780 = vweird.f32 %v2774
        %vm2781 = vmor %vm2779, %vm2780
        %v2782 = vsel %vm2781, %v2774, %v2778
        %v2783 = vand.u32 2147483647, %v1151
        %vm2784 = vcmp.eq.f32.partialorder %v2783, 8.507059e+37
        %v2785 = vand.u32 %v1151, 2147483648
        %v2786 = vor.u32 1.1754944e-38, %v2785
        %v2787 = vsel %vm2784, %v2786, %v2782
        %v2788 = vrcp.pop %v1152
        %v2789 = vmul.f32 %v1152, %v2788
        %v2790 = vsub.f32 1.0, %v2789
        %v2791 = vmul.f32 %v2788, %v2790
        %v2792 = vadd.f32 %v2788, %v2791
        %vm2793 = vweird.f32 %v1152
        %vm2794 = vweird.f32 %v2788
        %vm2795 = vmor %vm2793, %vm2794
        %v2796 = vsel %vm2795, %v2788, %v2792
        %v2797 = vand.u32 2147483647, %v1152
        %vm2798 = vcmp.eq.f32.partialorder %v2797, 8.507059e+37
        %v2799 = vand.u32 %v1152, 2147483648
        %v2800 = vor.u32 1.1754944e-38, %v2799
        %v2801 = vsel %vm2798, %v2800, %v2796
        %v2802 = vrcp.pop %v1153
        %v2803 = vmul.f32 %v1153, %v2802
        %v2804 = vsub.f32 1.0, %v2803
        %v2805 = vmul.f32 %v2802, %v2804
        %v2806 = vadd.f32 %v2802, %v2805
        %vm2807 = vweird.f32 %v1153
        %vm2808 = vweird.f32 %v2802
        %vm2809 = vmor %vm2807, %vm2808
        %v2810 = vsel %vm2809, %v2802, %v2806
        %v2811 = vand.u32 2147483647, %v1153
        %vm2812 = vcmp.eq.f32.partialorder %v2811, 8.507059e+37
        %v2813 = vand.u32 %v1153, 2147483648
        %v2814 = vor.u32 1.1754944e-38, %v2813
        %v2815 = vsel %vm2812, %v2814, %v2810
        %v2816 = vrcp.pop %v1154
        %v2817 = vmul.f32 %v1154, %v2816
        %v2818 = vsub.f32 1.0, %v2817
        %v2819 = vmul.f32 %v2816, %v2818
        %v2820 = vadd.f32 %v2816, %v2819
        %vm2821 = vweird.f32 %v1154
        %vm2822 = vweird.f32 %v2816
        %vm2823 = vmor %vm2821, %vm2822
        %v2824 = vsel %vm2823, %v2816, %v2820
        %v2825 = vand.u32 2147483647, %v1154
        %vm2826 = vcmp.eq.f32.partialorder %v2825, 8.507059e+37
        %v2827 = vand.u32 %v1154, 2147483648
        %v2828 = vor.u32 1.1754944e-38, %v2827
        %v2829 = vsel %vm2826, %v2828, %v2824
        %v2830 = vrcp.pop %v1155
        %v2831 = vmul.f32 %v1155, %v2830
        %v2832 = vsub.f32 1.0, %v2831
        %v2833 = vmul.f32 %v2830, %v2832
        %v2834 = vadd.f32 %v2830, %v2833
        %vm2835 = vweird.f32 %v1155
        %vm2836 = vweird.f32 %v2830
        %vm2837 = vmor %vm2835, %vm2836
        %v2838 = vsel %vm2837, %v2830, %v2834
        %v2839 = vand.u32 2147483647, %v1155
        %vm2840 = vcmp.eq.f32.partialorder %v2839, 8.507059e+37
        %v2841 = vand.u32 %v1155, 2147483648
        %v2842 = vor.u32 1.1754944e-38, %v2841
        %v2843 = vsel %vm2840, %v2842, %v2838
        %v2844 = vrcp.pop %v1156
        %v2845 = vmul.f32 %v1156, %v2844
        %v2846 = vsub.f32 1.0, %v2845
        %v2847 = vmul.f32 %v2844, %v2846
        %v2848 = vadd.f32 %v2844, %v2847
        %vm2849 = vweird.f32 %v1156
        %vm2850 = vweird.f32 %v2844
        %vm2851 = vmor %vm2849, %vm2850
        %v2852 = vsel %vm2851, %v2844, %v2848
        %v2853 = vand.u32 2147483647, %v1156
        %vm2854 = vcmp.eq.f32.partialorder %v2853, 8.507059e+37
        %v2855 = vand.u32 %v1156, 2147483648
        %v2856 = vor.u32 1.1754944e-38, %v2855
        %v2857 = vsel %vm2854, %v2856, %v2852
        %v2858 = vrcp.pop %v1157
        %v2859 = vmul.f32 %v1157, %v2858
        %v2860 = vsub.f32 1.0, %v2859
        %v2861 = vmul.f32 %v2858, %v2860
        %v2862 = vadd.f32 %v2858, %v2861
        %vm2863 = vweird.f32 %v1157
        %vm2864 = vweird.f32 %v2858
        %vm2865 = vmor %vm2863, %vm2864
        %v2866 = vsel %vm2865, %v2858, %v2862
        %v2867 = vand.u32 2147483647, %v1157
        %vm2868 = vcmp.eq.f32.partialorder %v2867, 8.507059e+37
        %v2869 = vand.u32 %v1157, 2147483648
        %v2870 = vor.u32 1.1754944e-38, %v2869
        %v2871 = vsel %vm2868, %v2870, %v2866
        %v2872 = vrcp.pop %v1158
        %v2873 = vmul.f32 %v1158, %v2872
        %v2874 = vsub.f32 1.0, %v2873
        %v2875 = vmul.f32 %v2872, %v2874
        %v2876 = vadd.f32 %v2872, %v2875
        %vm2877 = vweird.f32 %v1158
        %vm2878 = vweird.f32 %v2872
        %vm2879 = vmor %vm2877, %vm2878
        %v2880 = vsel %vm2879, %v2872, %v2876
        %v2881 = vand.u32 2147483647, %v1158
        %vm2882 = vcmp.eq.f32.partialorder %v2881, 8.507059e+37
        %v2883 = vand.u32 %v1158, 2147483648
        %v2884 = vor.u32 1.1754944e-38, %v2883
        %v2885 = vsel %vm2882, %v2884, %v2880
        %v2886 = vrcp.pop %v1159
        %v2887 = vmul.f32 %v1159, %v2886
        %v2888 = vsub.f32 1.0, %v2887
        %v2889 = vmul.f32 %v2886, %v2888
        %v2890 = vadd.f32 %v2886, %v2889
        %vm2891 = vweird.f32 %v1159
        %vm2892 = vweird.f32 %v2886
        %vm2893 = vmor %vm2891, %vm2892
        %v2894 = vsel %vm2893, %v2886, %v2890
        %v2895 = vand.u32 2147483647, %v1159
        %vm2896 = vcmp.eq.f32.partialorder %v2895, 8.507059e+37
        %v2897 = vand.u32 %v1159, 2147483648
        %v2898 = vor.u32 1.1754944e-38, %v2897
        %v2899 = vsel %vm2896, %v2898, %v2894
        %v2900 = vrcp.pop %v1160
        %v2901 = vmul.f32 %v1160, %v2900
        %v2902 = vsub.f32 1.0, %v2901
        %v2903 = vmul.f32 %v2900, %v2902
        %v2904 = vadd.f32 %v2900, %v2903
        %vm2905 = vweird.f32 %v1160
        %vm2906 = vweird.f32 %v2900
        %vm2907 = vmor %vm2905, %vm2906
        %v2908 = vsel %vm2907, %v2900, %v2904
        %v2909 = vand.u32 2147483647, %v1160
        %vm2910 = vcmp.eq.f32.partialorder %v2909, 8.507059e+37
        %v2911 = vand.u32 %v1160, 2147483648
        %v2912 = vor.u32 1.1754944e-38, %v2911
        %v2913 = vsel %vm2910, %v2912, %v2908
        %v2914 = vrcp.pop %v1161
        %v2915 = vmul.f32 %v1161, %v2914
        %v2916 = vsub.f32 1.0, %v2915
        %v2917 = vmul.f32 %v2914, %v2916
        %v2918 = vadd.f32 %v2914, %v2917
        %vm2919 = vweird.f32 %v1161
        %vm2920 = vweird.f32 %v2914
        %vm2921 = vmor %vm2919, %vm2920
        %v2922 = vsel %vm2921, %v2914, %v2918
        %v2923 = vand.u32 2147483647, %v1161
        %vm2924 = vcmp.eq.f32.partialorder %v2923, 8.507059e+37
        %v2925 = vand.u32 %v1161, 2147483648
        %v2926 = vor.u32 1.1754944e-38, %v2925
        %v2927 = vsel %vm2924, %v2926, %v2922
        %v2928 = vrcp.pop %v1162
        %v2929 = vmul.f32 %v1162, %v2928
        %v2930 = vsub.f32 1.0, %v2929
        %v2931 = vmul.f32 %v2928, %v2930
        %v2932 = vadd.f32 %v2928, %v2931
        %vm2933 = vweird.f32 %v1162
        %vm2934 = vweird.f32 %v2928
        %vm2935 = vmor %vm2933, %vm2934
        %v2936 = vsel %vm2935, %v2928, %v2932
        %v2937 = vand.u32 2147483647, %v1162
        %vm2938 = vcmp.eq.f32.partialorder %v2937, 8.507059e+37
        %v2939 = vand.u32 %v1162, 2147483648
        %v2940 = vor.u32 1.1754944e-38, %v2939
        %v2941 = vsel %vm2938, %v2940, %v2936
        %v2942 = vrcp.pop %v1163
        %v2943 = vmul.f32 %v1163, %v2942
        %v2944 = vsub.f32 1.0, %v2943
        %v2945 = vmul.f32 %v2942, %v2944
        %v2946 = vadd.f32 %v2942, %v2945
        %vm2947 = vweird.f32 %v1163
        %vm2948 = vweird.f32 %v2942
        %vm2949 = vmor %vm2947, %vm2948
        %v2950 = vsel %vm2949, %v2942, %v2946
        %v2951 = vand.u32 2147483647, %v1163
        %vm2952 = vcmp.eq.f32.partialorder %v2951, 8.507059e+37
        %v2953 = vand.u32 %v1163, 2147483648
        %v2954 = vor.u32 1.1754944e-38, %v2953
        %v2955 = vsel %vm2952, %v2954, %v2950
        %v2956 = vmul.f32 %v908, %v1177
        %v2957 = vmul.f32 %v909, %v1191
        %v2958 = vmul.f32 %v910, %v1205
        %v2959 = vmul.f32 %v911, %v1219
        %v2960 = vmul.f32 %v912, %v1233
        %v2961 = vmul.f32 %v913, %v1247
        %v2962 = vmul.f32 %v914, %v1261
        %v2963 = vmul.f32 %v915, %v1275
        %v2964 = vmul.f32 %v916, %v1289
        %v2965 = vmul.f32 %v917, %v1303
        %v2966 = vmul.f32 %v918, %v1317
        %v2967 = vmul.f32 %v919, %v1331
        %v2968 = vmul.f32 %v920, %v1345
        %v2969 = vmul.f32 %v921, %v1359
        %v2970 = vmul.f32 %v922, %v1373
        %v2971 = vmul.f32 %v923, %v1387
        %v2972 = vmul.f32 %v924, %v1401
        %v2973 = vmul.f32 %v925, %v1415
        %v2974 = vmul.f32 %v926, %v1429
        %v2975 = vmul.f32 %v927, %v1443
        %v2976 = vmul.f32 %v928, %v1457
        %v2977 = vmul.f32 %v929, %v1471
        %v2978 = vmul.f32 %v930, %v1485
        %v2979 = vmul.f32 %v931, %v1499
        %v2980 = vmul.f32 %v932, %v1513
        %v2981 = vmul.f32 %v933, %v1527
        %v2982 = vmul.f32 %v934, %v1541
        %v2983 = vmul.f32 %v935, %v1555
        %v2984 = vmul.f32 %v936, %v1569
        %v2985 = vmul.f32 %v937, %v1583
        %v2986 = vmul.f32 %v938, %v1597
        %v2987 = vmul.f32 %v939, %v1611
        %v2988 = vmul.f32 %v940, %v1625
        %v2989 = vmul.f32 %v941, %v1639
        %v2990 = vmul.f32 %v942, %v1653
        %v2991 = vmul.f32 %v943, %v1667
        %v2992 = vmul.f32 %v944, %v1681
        %v2993 = vmul.f32 %v945, %v1695
        %v2994 = vmul.f32 %v946, %v1709
        %v2995 = vmul.f32 %v947, %v1723
        %v2996 = vmul.f32 %v948, %v1737
        %v2997 = vmul.f32 %v949, %v1751
        %v2998 = vmul.f32 %v950, %v1765
        %v2999 = vmul.f32 %v951, %v1779
        %v3000 = vmul.f32 %v952, %v1793
        %v3001 = vmul.f32 %v953, %v1807
        %v3002 = vmul.f32 %v954, %v1821
        %v3003 = vmul.f32 %v955, %v1835
        %v3004 = vmul.f32 %v956, %v1849
        %v3005 = vmul.f32 %v957, %v1863
        %v3006 = vmul.f32 %v958, %v1877
        %v3007 = vmul.f32 %v959, %v1891
        %v3008 = vmul.f32 %v960, %v1905
        %v3009 = vmul.f32 %v961, %v1919
        %v3010 = vmul.f32 %v962, %v1933
        %v3011 = vmul.f32 %v963, %v1947
        %v3012 = vmul.f32 %v964, %v1961
        %v3013 = vmul.f32 %v965, %v1975
        %v3014 = vmul.f32 %v966, %v1989
        %v3015 = vmul.f32 %v967, %v2003
        %v3016 = vmul.f32 %v968, %v2017
        %v3017 = vmul.f32 %v969, %v2031
        %v3018 = vmul.f32 %v970, %v2045
        %v3019 = vmul.f32 %v971, %v2059
        %v3020 = vmul.f32 %v972, %v2073
        %v3021 = vmul.f32 %v973, %v2087
        %v3022 = vmul.f32 %v974, %v2101
        %v3023 = vmul.f32 %v975, %v2115
        %v3024 = vmul.f32 %v976, %v2129
        %v3025 = vmul.f32 %v977, %v2143
        %v3026 = vmul.f32 %v978, %v2157
        %v3027 = vmul.f32 %v979, %v2171
        %v3028 = vmul.f32 %v980, %v2185
        %v3029 = vmul.f32 %v981, %v2199
        %v3030 = vmul.f32 %v982, %v2213
        %v3031 = vmul.f32 %v983, %v2227
        %v3032 = vmul.f32 %v984, %v2241
        %v3033 = vmul.f32 %v985, %v2255
        %v3034 = vmul.f32 %v986, %v2269
        %v3035 = vmul.f32 %v987, %v2283
        %v3036 = vmul.f32 %v988, %v2297
        %v3037 = vmul.f32 %v989, %v2311
        %v3038 = vmul.f32 %v990, %v2325
        %v3039 = vmul.f32 %v991, %v2339
        %v3040 = vmul.f32 %v992, %v2353
        %v3041 = vmul.f32 %v993, %v2367
        %v3042 = vmul.f32 %v994, %v2381
        %v3043 = vmul.f32 %v995, %v2395
        %v3044 = vmul.f32 %v996, %v2409
        %v3045 = vmul.f32 %v997, %v2423
        %v3046 = vmul.f32 %v998, %v2437
        %v3047 = vmul.f32 %v999, %v2451
        %v3048 = vmul.f32 %v1000, %v2465
        %v3049 = vmul.f32 %v1001, %v2479
        %v3050 = vmul.f32 %v1002, %v2493
        %v3051 = vmul.f32 %v1003, %v2507
        %v3052 = vmul.f32 %v1004, %v2521
        %v3053 = vmul.f32 %v1005, %v2535
        %v3054 = vmul.f32 %v1006, %v2549
        %v3055 = vmul.f32 %v1007, %v2563
        %v3056 = vmul.f32 %v1008, %v2577
        %v3057 = vmul.f32 %v1009, %v2591
        %v3058 = vmul.f32 %v1010, %v2605
        %v3059 = vmul.f32 %v1011, %v2619
        %v3060 = vmul.f32 %v1012, %v2633
        %v3061 = vmul.f32 %v1013, %v2647
        %v3062 = vmul.f32 %v1014, %v2661
        %v3063 = vmul.f32 %v1015, %v2675
        %v3064 = vmul.f32 %v1016, %v2689
        %v3065 = vmul.f32 %v1017, %v2703
        %v3066 = vmul.f32 %v1018, %v2717
        %v3067 = vmul.f32 %v1019, %v2731
        %v3068 = vmul.f32 %v1020, %v2745
        %v3069 = vmul.f32 %v1021, %v2759
        %v3070 = vmul.f32 %v1022, %v2773
        %v3071 = vmul.f32 %v1023, %v2787
        %v3072 = vmul.f32 %v1024, %v2801
        %v3073 = vmul.f32 %v1025, %v2815
        %v3074 = vmul.f32 %v1026, %v2829
        %v3075 = vmul.f32 %v1027, %v2843
        %v3076 = vmul.f32 %v1028, %v2857
        %v3077 = vmul.f32 %v1029, %v2871
        %v3078 = vmul.f32 %v1030, %v2885
        %v3079 = vmul.f32 %v1031, %v2899
        %v3080 = vmul.f32 %v1032, %v2913
        %v3081 = vmul.f32 %v1033, %v2927
        %v3082 = vmul.f32 %v1034, %v2941
        %v3083 = vmul.f32 %v1035, %v2955
        %3084 = vst [vmem:[%s137] sm:$0xff] %v2956
        %3085 = vst [vmem:[%s137 + $0x8] sm:$0xff] %v2957
        %3086 = vst [vmem:[%s137 + $0x10] sm:$0xff] %v2958
        %3087 = vst [vmem:[%s137 + $0x18] sm:$0xff] %v2959
        %3088 = vst [vmem:[%s137 + $0x20] sm:$0xff] %v2960
        %3089 = vst [vmem:[%s137 + $0x28] sm:$0xff] %v2961
        %3090 = vst [vmem:[%s137 + $0x30] sm:$0xff] %v2962
        %3091 = vst [vmem:[%s137 + $0x38] sm:$0xff] %v2963
        %3092 = vst [vmem:[%s137 + $0x40] sm:$0xff] %v2964
        %3093 = vst [vmem:[%s137 + $0x48] sm:$0xff] %v2965
        %3094 = vst [vmem:[%s137 + $0x50] sm:$0xff] %v2966
        %3095 = vst [vmem:[%s137 + $0x58] sm:$0xff] %v2967
        %3096 = vst [vmem:[%s137 + $0x60] sm:$0xff] %v2968
        %3097 = vst [vmem:[%s137 + $0x68] sm:$0xff] %v2969
        %3098 = vst [vmem:[%s137 + $0x70] sm:$0xff] %v2970
        %3099 = vst [vmem:[%s137 + $0x78] sm:$0xff] %v2971
        %3100 = vst [vmem:[%s137 + $0x80] sm:$0xff] %v2972
        %3101 = vst [vmem:[%s137 + $0x88] sm:$0xff] %v2973
        %3102 = vst [vmem:[%s137 + $0x90] sm:$0xff] %v2974
        %3103 = vst [vmem:[%s137 + $0x98] sm:$0xff] %v2975
        %3104 = vst [vmem:[%s137 + $0xa0] sm:$0xff] %v2976
        %3105 = vst [vmem:[%s137 + $0xa8] sm:$0xff] %v2977
        %3106 = vst [vmem:[%s137 + $0xb0] sm:$0xff] %v2978
        %3107 = vst [vmem:[%s137 + $0xb8] sm:$0xff] %v2979
        %3108 = vst [vmem:[%s137 + $0xc0] sm:$0xff] %v2980
        %3109 = vst [vmem:[%s137 + $0xc8] sm:$0xff] %v2981
        %3110 = vst [vmem:[%s137 + $0xd0] sm:$0xff] %v2982
        %3111 = vst [vmem:[%s137 + $0xd8] sm:$0xff] %v2983
        %3112 = vst [vmem:[%s137 + $0xe0] sm:$0xff] %v2984
        %3113 = vst [vmem:[%s137 + $0xe8] sm:$0xff] %v2985
        %3114 = vst [vmem:[%s137 + $0xf0] sm:$0xff] %v2986
        %3115 = vst [vmem:[%s137 + $0xf8] sm:$0xff] %v2987
        %3116 = vst [vmem:[%s137 + $0x100] sm:$0xff] %v2988
        %3117 = vst [vmem:[%s137 + $0x108] sm:$0xff] %v2989
        %3118 = vst [vmem:[%s137 + $0x110] sm:$0xff] %v2990
        %3119 = vst [vmem:[%s137 + $0x118] sm:$0xff] %v2991
        %3120 = vst [vmem:[%s137 + $0x120] sm:$0xff] %v2992
        %3121 = vst [vmem:[%s137 + $0x128] sm:$0xff] %v2993
        %3122 = vst [vmem:[%s137 + $0x130] sm:$0xff] %v2994
        %3123 = vst [vmem:[%s137 + $0x138] sm:$0xff] %v2995
        %3124 = vst [vmem:[%s137 + $0x140] sm:$0xff] %v2996
        %3125 = vst [vmem:[%s137 + $0x148] sm:$0xff] %v2997
        %3126 = vst [vmem:[%s137 + $0x150] sm:$0xff] %v2998
        %3127 = vst [vmem:[%s137 + $0x158] sm:$0xff] %v2999
        %3128 = vst [vmem:[%s137 + $0x160] sm:$0xff] %v3000
        %3129 = vst [vmem:[%s137 + $0x168] sm:$0xff] %v3001
        %3130 = vst [vmem:[%s137 + $0x170] sm:$0xff] %v3002
        %3131 = vst [vmem:[%s137 + $0x178] sm:$0xff] %v3003
        %3132 = vst [vmem:[%s137 + $0x180] sm:$0xff] %v3004
        %3133 = vst [vmem:[%s137 + $0x188] sm:$0xff] %v3005
        %3134 = vst [vmem:[%s137 + $0x190] sm:$0xff] %v3006
        %3135 = vst [vmem:[%s137 + $0x198] sm:$0xff] %v3007
        %3136 = vst [vmem:[%s137 + $0x1a0] sm:$0xff] %v3008
        %3137 = vst [vmem:[%s137 + $0x1a8] sm:$0xff] %v3009
        %3138 = vst [vmem:[%s137 + $0x1b0] sm:$0xff] %v3010
        %3139 = vst [vmem:[%s137 + $0x1b8] sm:$0xff] %v3011
        %3140 = vst [vmem:[%s137 + $0x1c0] sm:$0xff] %v3012
        %3141 = vst [vmem:[%s137 + $0x1c8] sm:$0xff] %v3013
        %3142 = vst [vmem:[%s137 + $0x1d0] sm:$0xff] %v3014
        %3143 = vst [vmem:[%s137 + $0x1d8] sm:$0xff] %v3015
        %3144 = vst [vmem:[%s137 + $0x1e0] sm:$0xff] %v3016
        %3145 = vst [vmem:[%s137 + $0x1e8] sm:$0xff] %v3017
        %3146 = vst [vmem:[%s137 + $0x1f0] sm:$0xff] %v3018
        %3147 = vst [vmem:[%s137 + $0x1f8] sm:$0xff] %v3019
        %3148 = vst [vmem:[%s137 + $0x200] sm:$0xff] %v3020
        %3149 = vst [vmem:[%s137 + $0x208] sm:$0xff] %v3021
        %3150 = vst [vmem:[%s137 + $0x210] sm:$0xff] %v3022
        %3151 = vst [vmem:[%s137 + $0x218] sm:$0xff] %v3023
        %3152 = vst [vmem:[%s137 + $0x220] sm:$0xff] %v3024
        %3153 = vst [vmem:[%s137 + $0x228] sm:$0xff] %v3025
        %3154 = vst [vmem:[%s137 + $0x230] sm:$0xff] %v3026
        %3155 = vst [vmem:[%s137 + $0x238] sm:$0xff] %v3027
        %3156 = vst [vmem:[%s137 + $0x240] sm:$0xff] %v3028
        %3157 = vst [vmem:[%s137 + $0x248] sm:$0xff] %v3029
        %3158 = vst [vmem:[%s137 + $0x250] sm:$0xff] %v3030
        %3159 = vst [vmem:[%s137 + $0x258] sm:$0xff] %v3031
        %3160 = vst [vmem:[%s137 + $0x260] sm:$0xff] %v3032
        %3161 = vst [vmem:[%s137 + $0x268] sm:$0xff] %v3033
        %3162 = vst [vmem:[%s137 + $0x270] sm:$0xff] %v3034
        %3163 = vst [vmem:[%s137 + $0x278] sm:$0xff] %v3035
        %3164 = vst [vmem:[%s137 + $0x280] sm:$0xff] %v3036
        %3165 = vst [vmem:[%s137 + $0x288] sm:$0xff] %v3037
        %3166 = vst [vmem:[%s137 + $0x290] sm:$0xff] %v3038
        %3167 = vst [vmem:[%s137 + $0x298] sm:$0xff] %v3039
        %3168 = vst [vmem:[%s137 + $0x2a0] sm:$0xff] %v3040
        %3169 = vst [vmem:[%s137 + $0x2a8] sm:$0xff] %v3041
        %3170 = vst [vmem:[%s137 + $0x2b0] sm:$0xff] %v3042
        %3171 = vst [vmem:[%s137 + $0x2b8] sm:$0xff] %v3043
        %3172 = vst [vmem:[%s137 + $0x2c0] sm:$0xff] %v3044
        %3173 = vst [vmem:[%s137 + $0x2c8] sm:$0xff] %v3045
        %3174 = vst [vmem:[%s137 + $0x2d0] sm:$0xff] %v3046
        %3175 = vst [vmem:[%s137 + $0x2d8] sm:$0xff] %v3047
        %3176 = vst [vmem:[%s137 + $0x2e0] sm:$0xff] %v3048
        %3177 = vst [vmem:[%s137 + $0x2e8] sm:$0xff] %v3049
        %3178 = vst [vmem:[%s137 + $0x2f0] sm:$0xff] %v3050
        %3179 = vst [vmem:[%s137 + $0x2f8] sm:$0xff] %v3051
        %3180 = vst [vmem:[%s137 + $0x300] sm:$0xff] %v3052
        %3181 = vst [vmem:[%s137 + $0x308] sm:$0xff] %v3053
        %3182 = vst [vmem:[%s137 + $0x310] sm:$0xff] %v3054
        %3183 = vst [vmem:[%s137 + $0x318] sm:$0xff] %v3055
        %3184 = vst [vmem:[%s137 + $0x320] sm:$0xff] %v3056
        %3185 = vst [vmem:[%s137 + $0x328] sm:$0xff] %v3057
        %3186 = vst [vmem:[%s137 + $0x330] sm:$0xff] %v3058
        %3187 = vst [vmem:[%s137 + $0x338] sm:$0xff] %v3059
        %3188 = vst [vmem:[%s137 + $0x340] sm:$0xff] %v3060
        %3189 = vst [vmem:[%s137 + $0x348] sm:$0xff] %v3061
        %3190 = vst [vmem:[%s137 + $0x350] sm:$0xff] %v3062
        %3191 = vst [vmem:[%s137 + $0x358] sm:$0xff] %v3063
        %3192 = vst [vmem:[%s137 + $0x360] sm:$0xff] %v3064
        %3193 = vst [vmem:[%s137 + $0x368] sm:$0xff] %v3065
        %3194 = vst [vmem:[%s137 + $0x370] sm:$0xff] %v3066
        %3195 = vst [vmem:[%s137 + $0x378] sm:$0xff] %v3067
        %3196 = vst [vmem:[%s137 + $0x380] sm:$0xff] %v3068
        %3197 = vst [vmem:[%s137 + $0x388] sm:$0xff] %v3069
        %3198 = vst [vmem:[%s137 + $0x390] sm:$0xff] %v3070
        %3199 = vst [vmem:[%s137 + $0x398] sm:$0xff] %v3071
        %3200 = vst [vmem:[%s137 + $0x3a0] sm:$0xff] %v3072
        %3201 = vst [vmem:[%s137 + $0x3a8] sm:$0xff] %v3073
        %3202 = vst [vmem:[%s137 + $0x3b0] sm:$0xff] %v3074
        %3203 = vst [vmem:[%s137 + $0x3b8] sm:$0xff] %v3075
        %3204 = vst [vmem:[%s137 + $0x3c0] sm:$0xff] %v3076
        %3205 = vst [vmem:[%s137 + $0x3c8] sm:$0xff] %v3077
        %3206 = vst [vmem:[%s137 + $0x3d0] sm:$0xff] %v3078
        %3207 = vst [vmem:[%s137 + $0x3d8] sm:$0xff] %v3079
        %3208 = vst [vmem:[%s137 + $0x3e0] sm:$0xff] %v3080
        %3209 = vst [vmem:[%s137 + $0x3e8] sm:$0xff] %v3081
        %3210 = vst [vmem:[%s137 + $0x3f0] sm:$0xff] %v3082
        %3211 = vst [vmem:[%s137 + $0x3f8] sm:$0xff] %v3083
        %s3212 = sand.u32 %s52, 1
        %s3213 = scalar_lea.sflag [#allocation4], %s3212
        %s3214 = sand.u32 %s52, 1
        %s3215 = smul.addr %s3214, 1024
        %s3216 = scalar_lea.vmem [#allocation5], %s3215
        // Predicated region
        $region29: #{tpu_custom_call.1} parent=23 // pred_check
          %p3217 = pneg %p62
        $region30: #{tpu_custom_call.1} parent=23 // pred_check_branch
          %3219 = sbr.rel (%p3217) target = $region32
        $region31: #{tpu_custom_call.1} parent=23 // pred_region
          %s3220 = smul.u32 16, %s18
          %3222 = vsyncadd %s3213, 0
          %s3223 = smul.addr %s3220, 8
          %s3224 = smul.addr %s3223, 8
          %s3225 = scalar_lea.hbm %s1, %s3224
          %s3226 = sshll.u32 %s3216, 4
          %s3227 = int_to_ptr.vmem [resolvable:$true] %s3226
          %s3228 = sshll.u32 %s3225, 4
          %s3229 = int_to_ptr.hbm [resolvable:$true] %s3228
          %3234 = dma.vmem_to_hbm [thread:$0]  %s3227, 16384, %s3229, %s3213, 1024, 1024, 64
        $region32: #{tpu_custom_call.1} parent=23 // pred_fallthru
          _
      $region24: #{tpu_custom_call.1} parent=5 // pred_fallthru
        _
      %p3235 = scmp.le.s32.totalorder 2, %s13
      // Predicated region
      $region33: #{tpu_custom_call.1} parent=5 // pred_check
        %p3236 = pneg %p3235
      $region34: #{tpu_custom_call.1} parent=5 // pred_check_branch
        %3238 = sbr.rel (%p3236) target = $region36
      $region35: #{tpu_custom_call.1} parent=5 // pred_region
        %s3239 = ssub.s32 %s13, 2
        // Predicated region
        $region37: #{tpu_custom_call.1} parent=35 // pred_check
          %p3240 = pneg %p68
        $region38: #{tpu_custom_call.1} parent=35 // pred_check_branch
          %3242 = sbr.rel (%p3240) target = $region40
        $region39: #{tpu_custom_call.1} parent=35 // pred_region
          %s3243 = sand.u32 %s53, 1
          %s3244 = scalar_lea.sflag [#allocation4], %s3243
          %s3245 = sand.u32 %s53, 1
          %s3246 = smul.addr %s3245, 1024
          %s3247 = scalar_lea.vmem [#allocation5], %s3246
          %3249 = dma.done %s3244, 16384
        $region40: #{tpu_custom_call.1} parent=35 // pred_fallthru
          _
      $region36: #{tpu_custom_call.1} parent=5 // pred_fallthru
        _
    $region6: #{tpu_custom_call.1} parent=1 // loop_footer
      %s17 = sadd.s32 1, %s13
    $region7: #{tpu_custom_call.1} parent=1 // loop_footer_branch
      %12 = sbr.rel target = $region3
    $region8: #{tpu_custom_call.1} parent=1 // loop_exit
      _
    %3250 = vsyncpa [#allocation3], 1
    %s3251 = scalar_lea.sflag [#allocation3], 1
    %3252 = vsyncpa %s3251, 1
    %3253 = vsyncpa [#allocation4], 1
    %s3254 = scalar_lea.sflag [#allocation4], 1
    %3255 = vsyncpa %s3254, 1

</llo_original>
